<compile_context>
chip_gen: v5e
topology: v5e:2x2
jax: 0.10.0
libtpu: 0.0.40
codegen_flags: <defaults>
</compile_context>

<pallas_src>
import math
import functools

import jax
import jax.numpy as jnp
from jax import lax
from jax.experimental import pallas as pl
from jax.experimental.pallas import tpu as pltpu


# ----------------------------------------------------------------------------
# Kernel helpers
# ----------------------------------------------------------------------------
def _layernorm(x, gamma, beta, eps=1e-5):
    mu = jnp.mean(x, axis=-1, keepdims=True)
    var = jnp.mean((x - mu) ** 2, axis=-1, keepdims=True)
    return (x - mu) * lax.rsqrt(var + eps) * gamma + beta


# ----------------------------------------------------------------------------
# Fused forward kernel. Grid = (batch tiles, layers); activations live in a
# persistent VMEM scratch across the layer axis.
# ----------------------------------------------------------------------------
def fused_transformer_kernel(
    x_ref,                      # [Bt, S, ninp] f32
    pe_ref,                     # [S, D]        f32
    w_lin_ref, b_lin_ref,       # [ninp, D] bf16, [1, D] f32
    wqkv_ref, bqkv_ref,         # [1, D, 3D] bf16, [1, 1, 3D] f32   (layer l)
    wo_ref, bo_ref,             # [1, D, D]  bf16, [1, 1, D]  f32   (layer l)
    g1_ref, beta1_ref,          # [1, 1, D] f32
    w1_ref, b1_ref,             # [1, D, dff] bf16, [1, 1, dff] f32
    w2_ref, b2_ref,             # [1, dff, D] bf16, [1, 1, D] f32
    g2_ref, beta2_ref,          # [1, 1, D] f32
    w_dec_ref, b_dec_ref,       # [D, nout] bf16, [1, nout] f32
    o_ref,                      # [Bt, S, nout] f32
    act_ref,                    # scratch VMEM [Bt*S, D] f32 (layer carry)
    *, nhead, scale,
):
    layer = pl.program_id(1)
    nlayers = pl.num_programs(1)

    Bt, S, ninp = x_ref.shape
    D = pe_ref.shape[1]
    hd = D // nhead
    N = Bt * S
    inv_sqrt_hd = 1.0 / math.sqrt(hd)
    bf16 = jnp.bfloat16

    # ---- stage 0 (first layer step only): input Linear + ReLU, * sqrt(nhid),
    # + positional encoding; parked in the persistent VMEM scratch. ----------
    @pl.when(layer == 0)
    def _():
        x_in = x_ref[...].reshape(N, ninp)
        h = jnp.dot(x_in.astype(bf16), w_lin_ref[...],
                    preferred_element_type=jnp.float32) + b_lin_ref[...]
        h = jnp.maximum(h, 0.0) * scale                     # [N, D]
        h = h.reshape(Bt, S, D) + pe_ref[...]               # PE broadcast over Bt
        # TODO(synk): dropout (p=0.1 PE, p=0.5 encoder) is identity (eval mode).
        act_ref[...] = h.reshape(N, D)

    # ---- one TransformerEncoderLayer (post-norm, causal mask) --------------
    x = act_ref[...]                                        # [N, D] f32
    xb = x.astype(bf16)

    # Fused QKV projection: one full-width MXU call, f32 accumulate.
    qkv = jnp.dot(xb, wqkv_ref[0],
                  preferred_element_type=jnp.float32) + bqkv_ref[0]  # [N, 3D]

    # Head split via static lane slices stacked on the leading (batch) dim of
    # 3-D dot_generals: [H*Bt, S, hd].  No broadcast-to-heads, no transposes.
    def to_heads(base, scl=None):
        pieces = []
        for h in range(nhead):
            p = qkv[:, base + h * hd: base + (h + 1) * hd]  # [N, hd] f32
            if scl is not None:
                p = p * scl
            pieces.append(p.astype(bf16).reshape(Bt, S, hd))
        return jnp.concatenate(pieces, axis=0)              # [H*Bt, S, hd]

    q = to_heads(0, inv_sqrt_hd)
    k = to_heads(D)
    v = to_heads(2 * D)

    # Causal additive mask, (1,S,S), broadcast over all (head, batch) rows.
    row = lax.broadcasted_iota(jnp.int32, (1, S, S), 1)
    col = lax.broadcasted_iota(jnp.int32, (1, S, S), 2)
    neg_mask = jnp.where(col <= row, 0.0, -1e30).astype(jnp.float32)

    s = jnp.einsum("bqd,bkd->bqk", q, k,
                   preferred_element_type=jnp.float32)      # [H*Bt, S, S] f32
    s = s + neg_mask
    s = s - jnp.max(s, axis=-1, keepdims=True)
    p = jnp.exp(s)
    a = p * pl.reciprocal(jnp.sum(p, axis=-1, keepdims=True), approx=True)

    ctx = jnp.einsum("bqk,bkd->bqd", a.astype(bf16), v,
                     preferred_element_type=jnp.float32)    # [H*Bt, S, hd]

    # Re-pack heads into the lane axis -> [N, D]; output projection is ONE
    # [N,D]@[D,D] matmul so the MXU accumulator does the head reduction.
    ctx_cat = jnp.concatenate(
        [ctx[h * Bt:(h + 1) * Bt] for h in range(nhead)], axis=-1)  # [Bt,S,D]
    ctx2 = ctx_cat.reshape(N, D).astype(bf16)

    attn = jnp.dot(ctx2, wo_ref[0],
                   preferred_element_type=jnp.float32) + bo_ref[0]  # [N, D]

    # residual + layernorm 1 (post-norm, eps=1e-5); LN math stays f32.
    h1 = _layernorm(x + attn, g1_ref[0], beta1_ref[0])

    # --- feed forward --------------------------------------------------------
    ff = jnp.dot(h1.astype(bf16), w1_ref[0],
                 preferred_element_type=jnp.float32) + b1_ref[0]
    ff = jnp.maximum(ff, 0.0)
    ff = jnp.dot(ff.astype(bf16), w2_ref[0],
                 preferred_element_type=jnp.float32) + b2_ref[0]

    out = _layernorm(h1 + ff, g2_ref[0], beta2_ref[0])
    act_ref[...] = out

    # ---- decoder (last layer step only) -------------------------------------
    @pl.when(layer == nlayers - 1)
    def _():
        # NOTE: nout<128 means a partially-masked store; packing the decoder
        # output lane-dense is a further (v5e) optimization left out here.
        dec = jnp.dot(out.astype(bf16), w_dec_ref[...],
                      preferred_element_type=jnp.float32) + b_dec_ref[...]
        o_ref[...] = dec.reshape(Bt, S, o_ref.shape[-1])


# ----------------------------------------------------------------------------
# Wrapper
# ----------------------------------------------------------------------------
def transformer_forward(src, params, *, nhead):
    """src: [S, B, ninp] float32 -> [S, B, nout] float32 (eval-mode forward)."""
    S, B, ninp = src.shape
    nhid = params["pe"].shape[1]
    nout = params["w_dec"].shape[1]
    nlayers = params["wqkv"].shape[0]
    dff = params["w1"].shape[2]
    scale = math.sqrt(float(nhid))

    # Fold batch elements per grid step so matmul M-dim (Bt*S rows) approaches
    # an MXU pass (<=256 rows).
    Bt = 1
    for cand in range(B, 0, -1):
        if B % cand == 0 and cand * S <= 256:
            Bt = cand
            break
    nb = B // Bt
    N = Bt * S

    src_bm = jnp.transpose(src, (1, 0, 2))               # [B, S, ninp]
    pe = params["pe"][:S]                                 # [S, nhid]

    weight_args = (
        pe, params["w_lin"], params["b_lin"],
        params["wqkv"], params["bqkv"],
        params["wo"], params["bo"],
        params["g1"], params["beta1"],
        params["w1"], params["b1"], params["w2"], params["b2"],
        params["g2"], params["beta2"],
        params["w_dec"], params["b_dec"],
    )
    per_layer = (False, False, False,
                 True, True, True, True, True, True,
                 True, True, True, True, True, True,
                 False, False)

    def layer_spec(arr):
        # one layer's slice resident; default double-buffering overlaps the
        # next layer's weight DMA with this layer's compute.
        return pl.BlockSpec((1,) + arr.shape[1:],
                            lambda b, l, _nd=arr.ndim: (l,) + (0,) * (_nd - 1))

    def const_spec(arr):
        idx = lambda b, l, _nd=arr.ndim: (0,) * _nd
        try:  # grid-invariant: single buffer (halves weight VMEM footprint)
            return pl.BlockSpec(arr.shape, idx, pipeline_mode=pl.Buffered(1))
        except Exception:
            return pl.BlockSpec(arr.shape, idx)

    in_specs = [pl.BlockSpec((Bt, S, ninp), lambda b, l: (b, 0, 0))]
    for arr, is_layer in zip(weight_args, per_layer):
        in_specs.append(layer_spec(arr) if is_layer else const_spec(arr))

    # Explicit VMEM budget from the actual resident set (+2x headroom).
    f32b, bf16b = 4, 2
    resident = (
        (S * nhid + nhid + nout) * f32b + (ninp * nhid + nhid * nout) * bf16b
        + 2 * ((nhid * 3 * nhid + nhid * nhid + nhid * dff + dff * nhid) * bf16b
               + (3 * nhid + nhid + dff + 5 * nhid) * f32b)
        + 2 * N * (ninp + nout) * f32b + N * nhid * f32b
        + (N * 3 * nhid * 2 + nhead * Bt * S * S * 3 + N * dff + 8 * N * nhid) * f32b
    )
    vmem_limit = int(min(max(2 * resident, 32 << 20), 100 << 20))

    out_bm = pl.pallas_call(
        functools.partial(fused_transformer_kernel, nhead=nhead, scale=scale),
        out_shape=jax.ShapeDtypeStruct((B, S, nout), jnp.float32),
        grid=(nb, nlayers),
        in_specs=in_specs,
        out_specs=pl.BlockSpec((Bt, S, nout), lambda b, l: (b, 0, 0)),
        scratch_shapes=[pltpu.VMEM((N, nhid), jnp.float32)],
        compiler_params=pltpu.CompilerParams(
            dimension_semantics=("parallel", "arbitrary"),
            vmem_limit_bytes=vmem_limit,
        ),
    )(src_bm, *weight_args)

    return jnp.transpose(out_bm, (1, 0, 2))               # [S, B, nout]


# ----------------------------------------------------------------------------
# Deterministic parameter construction (kernel-friendly layouts)
# ----------------------------------------------------------------------------
def make_positional_encoding(max_len, d_model):
    position = jnp.arange(max_len, dtype=jnp.float32)[:, None]
    div_term = jnp.exp(
        jnp.arange(0, d_model, 2, dtype=jnp.float32)
        * (-math.log(10000.0) / d_model)
    )
    pe = jnp.zeros((max_len, d_model), jnp.float32)
    pe = pe.at[:, 0::2].set(jnp.sin(position * div_term))
    pe = pe.at[:, 1::2].set(jnp.cos(position * div_term))
    return pe                                             # [max_len, d_model]


def init_params(key, *, ninp, nhead, nhid, nlayers, nout, max_len=5000):
    dff = nhid   # TransformerEncoderLayer(nhid, nhead, dim_feedforward=nhid)
    bf16 = jnp.bfloat16

    def uni(k, shape, scl=0.1):
        return jax.random.uniform(k, shape, jnp.float32, -scl, scl)

    keys = jax.random.split(key, 4 + nlayers)
    params = {
        # weights stored pre-transposed so the kernel computes x @ W
        "w_lin": uni(keys[0], (ninp, nhid)).astype(bf16),
        "b_lin": uni(keys[1], (1, nhid)),
        "w_dec": uni(keys[2], (nhid, nout)).astype(bf16),  # init_weights U(-0.1,0.1)
        "b_dec": uni(keys[3], (1, nout)),
        "pe": make_positional_encoding(max_len, nhid),
    }

    names = ("wqkv", "bqkv", "wo", "bo", "g1", "beta1",
             "w1", "b1", "w2", "b2", "g2", "beta2")
    stacks = {n: [] for n in names}
    for li in range(nlayers):
        lk = jax.random.split(keys[4 + li], 12)
        wq, wk, wv = (uni(lk[0], (nhid, nhid)), uni(lk[1], (nhid, nhid)),
                      uni(lk[2], (nhid, nhid)))
        stacks["wqkv"].append(jnp.concatenate([wq, wk, wv], axis=1))   # [D, 3D]
        stacks["bqkv"].append(jnp.concatenate(
            [uni(lk[3], (1, nhid)), uni(lk[4], (1, nhid)), uni(lk[5], (1, nhid))],
            axis=1))                                                   # [1, 3D]
        stacks["wo"].append(uni(lk[6], (nhid, nhid)))                  # [D, D]
        stacks["bo"].append(uni(lk[7], (1, nhid)))
        stacks["g1"].append(jnp.ones((1, nhid), jnp.float32))
        stacks["beta1"].append(jnp.zeros((1, nhid), jnp.float32))
        stacks["w1"].append(uni(lk[8], (nhid, dff)))
        stacks["b1"].append(uni(lk[9], (1, dff)))
        stacks["w2"].append(uni(lk[10], (dff, nhid)))
        stacks["b2"].append(uni(lk[11], (1, nhid)))
        stacks["g2"].append(jnp.ones((1, nhid), jnp.float32))
        stacks["beta2"].append(jnp.zeros((1, nhid), jnp.float32))

    mxu_weights = {"wqkv", "wo", "w1", "w2"}
    for name in names:
        arr = jnp.stack(stacks[name], axis=0)
        params[name] = arr.astype(bf16) if name in mxu_weights else arr
    return params


# ----------------------------------------------------------------------------
# Main
# ----------------------------------------------------------------------------
if __name__ == "__main__":
    S, B = 8, 2
    ninp, nhead, nhid, nlayers, nout = 16, 4, 32, 2, 8

    key = jax.random.PRNGKey(0)
    k_param, k_x = jax.random.split(key)

    params = init_params(
        k_param, ninp=ninp, nhead=nhead, nhid=nhid, nlayers=nlayers, nout=nout
    )
    src = jax.random.normal(k_x, (S, B, ninp), jnp.float32)

    out = transformer_forward(src, params, nhead=nhead)
    out = jax.block_until_ready(out)

    assert out.shape == (S, B, nout), out.shape
    assert bool(jnp.all(jnp.isfinite(out)))
    print("KERNEL_OK")
</pallas_src>

<mosaic_0001>
module attributes {stable_mosaic.version = 11 : i64} {
  func.func @fused_transformer_kernel(%arg0: i32, %arg1: i32, %arg2: memref<2x8x16xf32, #tpu.memory_space<vmem>>, %arg3: memref<8x32xf32, #tpu.memory_space<vmem>>, %arg4: memref<16x32xbf16, #tpu.memory_space<vmem>>, %arg5: memref<1x32xf32, #tpu.memory_space<vmem>>, %arg6: memref<1x32x96xbf16, #tpu.memory_space<vmem>>, %arg7: memref<1x1x96xf32, #tpu.memory_space<vmem>>, %arg8: memref<1x32x32xbf16, #tpu.memory_space<vmem>>, %arg9: memref<1x1x32xf32, #tpu.memory_space<vmem>>, %arg10: memref<1x1x32xf32, #tpu.memory_space<vmem>>, %arg11: memref<1x1x32xf32, #tpu.memory_space<vmem>>, %arg12: memref<1x32x32xbf16, #tpu.memory_space<vmem>>, %arg13: memref<1x1x32xf32, #tpu.memory_space<vmem>>, %arg14: memref<1x32x32xbf16, #tpu.memory_space<vmem>>, %arg15: memref<1x1x32xf32, #tpu.memory_space<vmem>>, %arg16: memref<1x1x32xf32, #tpu.memory_space<vmem>>, %arg17: memref<1x1x32xf32, #tpu.memory_space<vmem>>, %arg18: memref<32x8xbf16, #tpu.memory_space<vmem>>, %arg19: memref<1x8xf32, #tpu.memory_space<vmem>>, %arg20: memref<2x8x8xf32, #tpu.memory_space<vmem>>, %arg21: memref<16x32xf32, #tpu.memory_space<vmem>>) attributes {dimension_semantics = [#tpu.dimension_semantics<parallel>, #tpu.dimension_semantics<arbitrary>], iteration_bounds = array<i64: 1, 2>, scalar_prefetch = 0 : i64, scratch_operands = 1 : i64, tpu.core_type = #tpu.core_type<tc>, window_params = [{transform_indices = @transform_0, window_bounds = array<i64: 2, 8, 16>}, {pipeline_mode = #tpu.pipeline_mode<synchronous>, transform_indices = @transform_1, window_bounds = array<i64: 8, 32>}, {pipeline_mode = #tpu.pipeline_mode<synchronous>, transform_indices = @transform_2, window_bounds = array<i64: 16, 32>}, {pipeline_mode = #tpu.pipeline_mode<synchronous>, transform_indices = @transform_3, window_bounds = array<i64: 1, 32>}, {transform_indices = @transform_4, window_bounds = array<i64: 1, 32, 96>}, {transform_indices = @transform_5, window_bounds = array<i64: 1, 1, 96>}, {transform_indices = @transform_6, window_bounds = array<i64: 1, 32, 32>}, {transform_indices = @transform_7, window_bounds = array<i64: 1, 1, 32>}, {transform_indices = @transform_8, window_bounds = array<i64: 1, 1, 32>}, {transform_indices = @transform_9, window_bounds = array<i64: 1, 1, 32>}, {transform_indices = @transform_10, window_bounds = array<i64: 1, 32, 32>}, {transform_indices = @transform_11, window_bounds = array<i64: 1, 1, 32>}, {transform_indices = @transform_12, window_bounds = array<i64: 1, 32, 32>}, {transform_indices = @transform_13, window_bounds = array<i64: 1, 1, 32>}, {transform_indices = @transform_14, window_bounds = array<i64: 1, 1, 32>}, {transform_indices = @transform_15, window_bounds = array<i64: 1, 1, 32>}, {pipeline_mode = #tpu.pipeline_mode<synchronous>, transform_indices = @transform_16, window_bounds = array<i64: 32, 8>}, {pipeline_mode = #tpu.pipeline_mode<synchronous>, transform_indices = @transform_17, window_bounds = array<i64: 1, 8>}, {transform_indices = @transform_18, window_bounds = array<i64: 2, 8, 8>}]} {
    %c0_i32 = arith.constant 0 : i32
    %0 = arith.cmpi eq, %arg1, %c0_i32 : i32
    %1 = arith.extui %0 : i1 to i32
    %c0_i32_0 = arith.constant 0 : i32
    %2 = arith.cmpi ne, %1, %c0_i32_0 : i32
    scf.if %2 {
      %c0_65 = arith.constant 0 : index
      %c0_66 = arith.constant 0 : index
      %c0_67 = arith.constant 0 : index
      %170 = vector.load %arg2[%c0_65, %c0_66, %c0_67] : memref<2x8x16xf32, #tpu.memory_space<vmem>>, vector<2x8x16xf32>
      %171 = vector.shape_cast %170 : vector<2x8x16xf32> to vector<16x16xf32>
      %172 = arith.truncf %171 : vector<16x16xf32> to vector<16x16xbf16>
      %c0_68 = arith.constant 0 : index
      %c0_69 = arith.constant 0 : index
      %173 = vector.load %arg4[%c0_68, %c0_69] : memref<16x32xbf16, #tpu.memory_space<vmem>>, vector<16x32xbf16>
      %cst_70 = arith.constant dense<0.000000e+00> : vector<16x32xf32>
      %174 = tpu.matmul %172, %173, %cst_70 {dimension_numbers = #tpu.dot_dimension_numbers<[1], [0], [0], [1], [0, 0, 1, 1], [], []>} : vector<16x16xbf16>, vector<16x32xbf16>, vector<16x32xf32> -> vector<16x32xf32>
      %c0_71 = arith.constant 0 : index
      %c0_72 = arith.constant 0 : index
      %175 = vector.load %arg5[%c0_71, %c0_72] : memref<1x32xf32, #tpu.memory_space<vmem>>, vector<1x32xf32>
      %176 = vector.broadcast %175 : vector<1x32xf32> to vector<16x32xf32>
      %177 = arith.addf %174, %176 : vector<16x32xf32>
      %cst_73 = arith.constant 0.000000e+00 : f32
      %178 = vector.broadcast %cst_73 : f32 to vector<16x32xf32>
      %179 = arith.maximumf %177, %178 : vector<16x32xf32>
      %cst_74 = arith.constant 5.65685415 : f32
      %180 = vector.broadcast %cst_74 : f32 to vector<16x32xf32>
      %181 = arith.mulf %179, %180 : vector<16x32xf32>
      %182 = vector.shape_cast %181 : vector<16x32xf32> to vector<2x8x32xf32>
      %c0_75 = arith.constant 0 : index
      %c0_76 = arith.constant 0 : index
      %183 = vector.load %arg3[%c0_75, %c0_76] : memref<8x32xf32, #tpu.memory_space<vmem>>, vector<8x32xf32>
      %184 = vector.shape_cast %183 : vector<8x32xf32> to vector<1x8x32xf32>
      %185 = vector.broadcast %184 : vector<1x8x32xf32> to vector<2x8x32xf32>
      %186 = arith.addf %182, %185 : vector<2x8x32xf32>
      %187 = vector.shape_cast %186 : vector<2x8x32xf32> to vector<16x32xf32>
      %c0_77 = arith.constant 0 : index
      %c0_78 = arith.constant 0 : index
      %188 = vector.load %arg21[%c0_77, %c0_78] : memref<16x32xf32, #tpu.memory_space<vmem>>, vector<16x32xf32>
      tpu.vector_store %arg21[%c0_77, %c0_78], %187 {strides = array<i32>} : memref<16x32xf32, #tpu.memory_space<vmem>>, vector<16x32xf32>,
    } else {
    }
    %c0 = arith.constant 0 : index
    %c0_1 = arith.constant 0 : index
    %3 = vector.load %arg21[%c0, %c0_1] : memref<16x32xf32, #tpu.memory_space<vmem>>, vector<16x32xf32>
    %4 = arith.truncf %3 : vector<16x32xf32> to vector<16x32xbf16>
    %c0_2 = arith.constant 0 : index
    %c0_3 = arith.constant 0 : index
    %c0_4 = arith.constant 0 : index
    %5 = vector.load %arg6[%c0_2, %c0_3, %c0_4] : memref<1x32x96xbf16, #tpu.memory_space<vmem>>, vector<1x32x96xbf16>
    %6 = vector.shape_cast %5 : vector<1x32x96xbf16> to vector<32x96xbf16>
    %cst = arith.constant dense<0.000000e+00> : vector<16x96xf32>
    %7 = tpu.matmul %4, %6, %cst {dimension_numbers = #tpu.dot_dimension_numbers<[1], [0], [0], [1], [0, 0, 1, 1], [], []>} : vector<16x32xbf16>, vector<32x96xbf16>, vector<16x96xf32> -> vector<16x96xf32>
    %c0_5 = arith.constant 0 : index
    %c0_6 = arith.constant 0 : index
    %c0_7 = arith.constant 0 : index
    %8 = vector.load %arg7[%c0_5, %c0_6, %c0_7] : memref<1x1x96xf32, #tpu.memory_space<vmem>>, vector<1x1x96xf32>
    %9 = vector.shape_cast %8 : vector<1x1x96xf32> to vector<1x96xf32>
    %10 = vector.broadcast %9 : vector<1x96xf32> to vector<16x96xf32>
    %11 = arith.addf %7, %10 : vector<16x96xf32>
    %12 = vector.extract_strided_slice %11 {offsets = [0, 0], sizes = [16, 8], strides = [1, 1]} : vector<16x96xf32> to vector<16x8xf32>
    %cst_8 = arith.constant 0.353553385 : f32
    %13 = vector.broadcast %cst_8 : f32 to vector<16x8xf32>
    %14 = arith.mulf %12, %13 : vector<16x8xf32>
    %15 = arith.truncf %14 : vector<16x8xf32> to vector<16x8xbf16>
    %16 = vector.shape_cast %15 : vector<16x8xbf16> to vector<2x8x8xbf16>
    %17 = vector.extract_strided_slice %11 {offsets = [0, 8], sizes = [16, 8], strides = [1, 1]} : vector<16x96xf32> to vector<16x8xf32>
    %cst_9 = arith.constant 0.353553385 : f32
    %18 = vector.broadcast %cst_9 : f32 to vector<16x8xf32>
    %19 = arith.mulf %17, %18 : vector<16x8xf32>
    %20 = arith.truncf %19 : vector<16x8xf32> to vector<16x8xbf16>
    %21 = vector.shape_cast %20 : vector<16x8xbf16> to vector<2x8x8xbf16>
    %22 = vector.extract_strided_slice %11 {offsets = [0, 16], sizes = [16, 8], strides = [1, 1]} : vector<16x96xf32> to vector<16x8xf32>
    %cst_10 = arith.constant 0.353553385 : f32
    %23 = vector.broadcast %cst_10 : f32 to vector<16x8xf32>
    %24 = arith.mulf %22, %23 : vector<16x8xf32>
    %25 = arith.truncf %24 : vector<16x8xf32> to vector<16x8xbf16>
    %26 = vector.shape_cast %25 : vector<16x8xbf16> to vector<2x8x8xbf16>
    %27 = vector.extract_strided_slice %11 {offsets = [0, 24], sizes = [16, 8], strides = [1, 1]} : vector<16x96xf32> to vector<16x8xf32>
    %cst_11 = arith.constant 0.353553385 : f32
    %28 = vector.broadcast %cst_11 : f32 to vector<16x8xf32>
    %29 = arith.mulf %27, %28 : vector<16x8xf32>
    %30 = arith.truncf %29 : vector<16x8xf32> to vector<16x8xbf16>
    %31 = vector.shape_cast %30 : vector<16x8xbf16> to vector<2x8x8xbf16>
    %32 = tpu.concatenate %16, %21, %26, %31 in 0 : vector<2x8x8xbf16>, vector<2x8x8xbf16>, vector<2x8x8xbf16>, vector<2x8x8xbf16> -> vector<8x8x8xbf16>
    %33 = vector.extract_strided_slice %11 {offsets = [0, 32], sizes = [16, 8], strides = [1, 1]} : vector<16x96xf32> to vector<16x8xf32>
    %34 = arith.truncf %33 : vector<16x8xf32> to vector<16x8xbf16>
    %35 = vector.shape_cast %34 : vector<16x8xbf16> to vector<2x8x8xbf16>
    %36 = vector.extract_strided_slice %11 {offsets = [0, 40], sizes = [16, 8], strides = [1, 1]} : vector<16x96xf32> to vector<16x8xf32>
    %37 = arith.truncf %36 : vector<16x8xf32> to vector<16x8xbf16>
    %38 = vector.shape_cast %37 : vector<16x8xbf16> to vector<2x8x8xbf16>
    %39 = vector.extract_strided_slice %11 {offsets = [0, 48], sizes = [16, 8], strides = [1, 1]} : vector<16x96xf32> to vector<16x8xf32>
    %40 = arith.truncf %39 : vector<16x8xf32> to vector<16x8xbf16>
    %41 = vector.shape_cast %40 : vector<16x8xbf16> to vector<2x8x8xbf16>
    %42 = vector.extract_strided_slice %11 {offsets = [0, 56], sizes = [16, 8], strides = [1, 1]} : vector<16x96xf32> to vector<16x8xf32>
    %43 = arith.truncf %42 : vector<16x8xf32> to vector<16x8xbf16>
    %44 = vector.shape_cast %43 : vector<16x8xbf16> to vector<2x8x8xbf16>
    %45 = tpu.concatenate %35, %38, %41, %44 in 0 : vector<2x8x8xbf16>, vector<2x8x8xbf16>, vector<2x8x8xbf16>, vector<2x8x8xbf16> -> vector<8x8x8xbf16>
    %46 = vector.extract_strided_slice %11 {offsets = [0, 64], sizes = [16, 8], strides = [1, 1]} : vector<16x96xf32> to vector<16x8xf32>
    %47 = arith.truncf %46 : vector<16x8xf32> to vector<16x8xbf16>
    %48 = vector.shape_cast %47 : vector<16x8xbf16> to vector<2x8x8xbf16>
    %49 = vector.extract_strided_slice %11 {offsets = [0, 72], sizes = [16, 8], strides = [1, 1]} : vector<16x96xf32> to vector<16x8xf32>
    %50 = arith.truncf %49 : vector<16x8xf32> to vector<16x8xbf16>
    %51 = vector.shape_cast %50 : vector<16x8xbf16> to vector<2x8x8xbf16>
    %52 = vector.extract_strided_slice %11 {offsets = [0, 80], sizes = [16, 8], strides = [1, 1]} : vector<16x96xf32> to vector<16x8xf32>
    %53 = arith.truncf %52 : vector<16x8xf32> to vector<16x8xbf16>
    %54 = vector.shape_cast %53 : vector<16x8xbf16> to vector<2x8x8xbf16>
    %55 = vector.extract_strided_slice %11 {offsets = [0, 88], sizes = [16, 8], strides = [1, 1]} : vector<16x96xf32> to vector<16x8xf32>
    %56 = arith.truncf %55 : vector<16x8xf32> to vector<16x8xbf16>
    %57 = vector.shape_cast %56 : vector<16x8xbf16> to vector<2x8x8xbf16>
    %58 = tpu.concatenate %48, %51, %54, %57 in 0 : vector<2x8x8xbf16>, vector<2x8x8xbf16>, vector<2x8x8xbf16>, vector<2x8x8xbf16> -> vector<8x8x8xbf16>
    %59 = tpu.iota {dimensions = array<i32: 1>} : vector<1x8x8xi32>
    %60 = tpu.iota {dimensions = array<i32: 2>} : vector<1x8x8xi32>
    %61 = arith.cmpi sle, %60, %59 : vector<1x8x8xi32>
    %cst_12 = arith.constant 0.000000e+00 : f32
    %cst_13 = arith.constant -1.000000e+30 : f32
    %62 = vector.broadcast %cst_12 : f32 to vector<1x8x8xf32>
    %63 = vector.broadcast %cst_13 : f32 to vector<1x8x8xf32>
    %64 = arith.select %61, %62, %63 : vector<1x8x8xi1>, vector<1x8x8xf32>
    "tpu.trace_start"() <{level = 10 : i32, message = "bqd,bkd->bqk"}> : () -> ()
    %cst_14 = arith.constant dense<0.000000e+00> : vector<8x8x8xf32>
    %65 = tpu.matmul %32, %45, %cst_14 {dimension_numbers = #tpu.dot_dimension_numbers<[2], [2], [1], [1], [0, 0, 0, 1, 1, 1], [0], [0]>} : vector<8x8x8xbf16>, vector<8x8x8xbf16>, vector<8x8x8xf32> -> vector<8x8x8xf32>
    "tpu.trace_stop"() : () -> ()
    %66 = vector.broadcast %64 : vector<1x8x8xf32> to vector<8x8x8xf32>
    %67 = arith.addf %65, %66 : vector<8x8x8xf32>
    %cst_15 = arith.constant dense<0xFF800000> : vector<8x8xf32>
    %68 = vector.multi_reduction <maximumf>, %67, %cst_15 [2] : vector<8x8x8xf32> to vector<8x8xf32>
    %69 = vector.shape_cast %68 : vector<8x8xf32> to vector<8x8x1xf32>
    %70 = vector.broadcast %69 : vector<8x8x1xf32> to vector<8x8x8xf32>
    %71 = arith.subf %67, %70 : vector<8x8x8xf32>
    %72 = math.exp %71 : vector<8x8x8xf32>
    %cst_16 = arith.constant dense<0.000000e+00> : vector<8x8xf32>
    %73 = vector.multi_reduction <add>, %72, %cst_16 [2] : vector<8x8x8xf32> to vector<8x8xf32>
    %74 = vector.shape_cast %73 : vector<8x8xf32> to vector<8x8x1xf32>
    %75 = tpu.reciprocal %74 {approx = true} : vector<8x8x1xf32> -> vector<8x8x1xf32>
    %76 = vector.broadcast %75 : vector<8x8x1xf32> to vector<8x8x8xf32>
    %77 = arith.mulf %72, %76 : vector<8x8x8xf32>
    %78 = arith.truncf %77 : vector<8x8x8xf32> to vector<8x8x8xbf16>
    "tpu.trace_start"() <{level = 10 : i32, message = "bqk,bkd->bqd"}> : () -> ()
    %cst_17 = arith.constant dense<0.000000e+00> : vector<8x8x8xf32>
    %79 = tpu.matmul %78, %58, %cst_17 {dimension_numbers = #tpu.dot_dimension_numbers<[2], [1], [1], [2], [0, 0, 0, 1, 1, 2], [0], [0]>} : vector<8x8x8xbf16>, vector<8x8x8xbf16>, vector<8x8x8xf32> -> vector<8x8x8xf32>
    "tpu.trace_stop"() : () -> ()
    %80 = vector.extract_strided_slice %79 {offsets = [0, 0, 0], sizes = [2, 8, 8], strides = [1, 1, 1]} : vector<8x8x8xf32> to vector<2x8x8xf32>
    %81 = vector.extract_strided_slice %79 {offsets = [2, 0, 0], sizes = [2, 8, 8], strides = [1, 1, 1]} : vector<8x8x8xf32> to vector<2x8x8xf32>
    %82 = vector.extract_strided_slice %79 {offsets = [4, 0, 0], sizes = [2, 8, 8], strides = [1, 1, 1]} : vector<8x8x8xf32> to vector<2x8x8xf32>
    %83 = vector.extract_strided_slice %79 {offsets = [6, 0, 0], sizes = [2, 8, 8], strides = [1, 1, 1]} : vector<8x8x8xf32> to vector<2x8x8xf32>
    %84 = tpu.concatenate %80, %81, %82, %83 in 2 : vector<2x8x8xf32>, vector<2x8x8xf32>, vector<2x8x8xf32>, vector<2x8x8xf32> -> vector<2x8x32xf32>
    %85 = vector.shape_cast %84 : vector<2x8x32xf32> to vector<16x32xf32>
    %86 = arith.truncf %85 : vector<16x32xf32> to vector<16x32xbf16>
    %c0_18 = arith.constant 0 : index
    %c0_19 = arith.constant 0 : index
    %c0_20 = arith.constant 0 : index
    %87 = vector.load %arg8[%c0_18, %c0_19, %c0_20] : memref<1x32x32xbf16, #tpu.memory_space<vmem>>, vector<1x32x32xbf16>
    %88 = vector.shape_cast %87 : vector<1x32x32xbf16> to vector<32x32xbf16>
    %cst_21 = arith.constant dense<0.000000e+00> : vector<16x32xf32>
    %89 = tpu.matmul %86, %88, %cst_21 {dimension_numbers = #tpu.dot_dimension_numbers<[1], [0], [0], [1], [0, 0, 1, 1], [], []>} : vector<16x32xbf16>, vector<32x32xbf16>, vector<16x32xf32> -> vector<16x32xf32>
    %c0_22 = arith.constant 0 : index
    %c0_23 = arith.constant 0 : index
    %c0_24 = arith.constant 0 : index
    %90 = vector.load %arg9[%c0_22, %c0_23, %c0_24] : memref<1x1x32xf32, #tpu.memory_space<vmem>>, vector<1x1x32xf32>
    %91 = vector.shape_cast %90 : vector<1x1x32xf32> to vector<1x32xf32>
    %92 = vector.broadcast %91 : vector<1x32xf32> to vector<16x32xf32>
    %93 = arith.addf %89, %92 : vector<16x32xf32>
    %94 = arith.addf %3, %93 : vector<16x32xf32>
    %c0_25 = arith.constant 0 : index
    %c0_26 = arith.constant 0 : index
    %c0_27 = arith.constant 0 : index
    %95 = vector.load %arg10[%c0_25, %c0_26, %c0_27] : memref<1x1x32xf32, #tpu.memory_space<vmem>>, vector<1x1x32xf32>
    %96 = vector.shape_cast %95 : vector<1x1x32xf32> to vector<1x32xf32>
    %c0_28 = arith.constant 0 : index
    %c0_29 = arith.constant 0 : index
    %c0_30 = arith.constant 0 : index
    %97 = vector.load %arg11[%c0_28, %c0_29, %c0_30] : memref<1x1x32xf32, #tpu.memory_space<vmem>>, vector<1x1x32xf32>
    %98 = vector.shape_cast %97 : vector<1x1x32xf32> to vector<1x32xf32>
    %cst_31 = arith.constant dense<0.000000e+00> : vector<16xf32>
    %99 = vector.multi_reduction <add>, %94, %cst_31 [1] : vector<16x32xf32> to vector<16xf32>
    %100 = vector.shape_cast %99 : vector<16xf32> to vector<16x1xf32>
    %cst_32 = arith.constant 3.200000e+01 : f32
    %101 = vector.broadcast %cst_32 : f32 to vector<16x1xf32>
    %102 = arith.divf %100, %101 : vector<16x1xf32>
    %103 = vector.broadcast %102 : vector<16x1xf32> to vector<16x32xf32>
    %104 = arith.subf %94, %103 : vector<16x32xf32>
    %105 = arith.mulf %104, %104 : vector<16x32xf32>
    %cst_33 = arith.constant dense<0.000000e+00> : vector<16xf32>
    %106 = vector.multi_reduction <add>, %105, %cst_33 [1] : vector<16x32xf32> to vector<16xf32>
    %107 = vector.shape_cast %106 : vector<16xf32> to vector<16x1xf32>
    %cst_34 = arith.constant 3.200000e+01 : f32
    %108 = vector.broadcast %cst_34 : f32 to vector<16x1xf32>
    %109 = arith.divf %107, %108 : vector<16x1xf32>
    %110 = vector.broadcast %102 : vector<16x1xf32> to vector<16x32xf32>
    %111 = arith.subf %94, %110 : vector<16x32xf32>
    %cst_35 = arith.constant 9.99999974E-6 : f32
    %112 = vector.broadcast %cst_35 : f32 to vector<16x1xf32>
    %113 = arith.addf %109, %112 : vector<16x1xf32>
    %114 = math.rsqrt %113 : vector<16x1xf32>
    %115 = vector.broadcast %114 : vector<16x1xf32> to vector<16x32xf32>
    %116 = arith.mulf %111, %115 : vector<16x32xf32>
    %117 = vector.broadcast %96 : vector<1x32xf32> to vector<16x32xf32>
    %118 = arith.mulf %116, %117 : vector<16x32xf32>
    %119 = vector.broadcast %98 : vector<1x32xf32> to vector<16x32xf32>
    %120 = arith.addf %118, %119 : vector<16x32xf32>
    %121 = arith.truncf %120 : vector<16x32xf32> to vector<16x32xbf16>
    %c0_36 = arith.constant 0 : index
    %c0_37 = arith.constant 0 : index
    %c0_38 = arith.constant 0 : index
    %122 = vector.load %arg12[%c0_36, %c0_37, %c0_38] : memref<1x32x32xbf16, #tpu.memory_space<vmem>>, vector<1x32x32xbf16>
    %123 = vector.shape_cast %122 : vector<1x32x32xbf16> to vector<32x32xbf16>
    %cst_39 = arith.constant dense<0.000000e+00> : vector<16x32xf32>
    %124 = tpu.matmul %121, %123, %cst_39 {dimension_numbers = #tpu.dot_dimension_numbers<[1], [0], [0], [1], [0, 0, 1, 1], [], []>} : vector<16x32xbf16>, vector<32x32xbf16>, vector<16x32xf32> -> vector<16x32xf32>
    %c0_40 = arith.constant 0 : index
    %c0_41 = arith.constant 0 : index
    %c0_42 = arith.constant 0 : index
    %125 = vector.load %arg13[%c0_40, %c0_41, %c0_42] : memref<1x1x32xf32, #tpu.memory_space<vmem>>, vector<1x1x32xf32>
    %126 = vector.shape_cast %125 : vector<1x1x32xf32> to vector<1x32xf32>
    %127 = vector.broadcast %126 : vector<1x32xf32> to vector<16x32xf32>
    %128 = arith.addf %124, %127 : vector<16x32xf32>
    %cst_43 = arith.constant 0.000000e+00 : f32
    %129 = vector.broadcast %cst_43 : f32 to vector<16x32xf32>
    %130 = arith.maximumf %128, %129 : vector<16x32xf32>
    %131 = arith.truncf %130 : vector<16x32xf32> to vector<16x32xbf16>
    %c0_44 = arith.constant 0 : index
    %c0_45 = arith.constant 0 : index
    %c0_46 = arith.constant 0 : index
    %132 = vector.load %arg14[%c0_44, %c0_45, %c0_46] : memref<1x32x32xbf16, #tpu.memory_space<vmem>>, vector<1x32x32xbf16>
    %133 = vector.shape_cast %132 : vector<1x32x32xbf16> to vector<32x32xbf16>
    %cst_47 = arith.constant dense<0.000000e+00> : vector<16x32xf32>
    %134 = tpu.matmul %131, %133, %cst_47 {dimension_numbers = #tpu.dot_dimension_numbers<[1], [0], [0], [1], [0, 0, 1, 1], [], []>} : vector<16x32xbf16>, vector<32x32xbf16>, vector<16x32xf32> -> vector<16x32xf32>
    %c0_48 = arith.constant 0 : index
    %c0_49 = arith.constant 0 : index
    %c0_50 = arith.constant 0 : index
    %135 = vector.load %arg15[%c0_48, %c0_49, %c0_50] : memref<1x1x32xf32, #tpu.memory_space<vmem>>, vector<1x1x32xf32>
    %136 = vector.shape_cast %135 : vector<1x1x32xf32> to vector<1x32xf32>
    %137 = vector.broadcast %136 : vector<1x32xf32> to vector<16x32xf32>
    %138 = arith.addf %134, %137 : vector<16x32xf32>
    %139 = arith.addf %120, %138 : vector<16x32xf32>
    %c0_51 = arith.constant 0 : index
    %c0_52 = arith.constant 0 : index
    %c0_53 = arith.constant 0 : index
    %140 = vector.load %arg16[%c0_51, %c0_52, %c0_53] : memref<1x1x32xf32, #tpu.memory_space<vmem>>, vector<1x1x32xf32>
    %141 = vector.shape_cast %140 : vector<1x1x32xf32> to vector<1x32xf32>
    %c0_54 = arith.constant 0 : index
    %c0_55 = arith.constant 0 : index
    %c0_56 = arith.constant 0 : index
    %142 = vector.load %arg17[%c0_54, %c0_55, %c0_56] : memref<1x1x32xf32, #tpu.memory_space<vmem>>, vector<1x1x32xf32>
    %143 = vector.shape_cast %142 : vector<1x1x32xf32> to vector<1x32xf32>
    %cst_57 = arith.constant dense<0.000000e+00> : vector<16xf32>
    %144 = vector.multi_reduction <add>, %139, %cst_57 [1] : vector<16x32xf32> to vector<16xf32>
    %145 = vector.shape_cast %144 : vector<16xf32> to vector<16x1xf32>
    %cst_58 = arith.constant 3.200000e+01 : f32
    %146 = vector.broadcast %cst_58 : f32 to vector<16x1xf32>
    %147 = arith.divf %145, %146 : vector<16x1xf32>
    %148 = vector.broadcast %147 : vector<16x1xf32> to vector<16x32xf32>
    %149 = arith.subf %139, %148 : vector<16x32xf32>
    %150 = arith.mulf %149, %149 : vector<16x32xf32>
    %cst_59 = arith.constant dense<0.000000e+00> : vector<16xf32>
    %151 = vector.multi_reduction <add>, %150, %cst_59 [1] : vector<16x32xf32> to vector<16xf32>
    %152 = vector.shape_cast %151 : vector<16xf32> to vector<16x1xf32>
    %cst_60 = arith.constant 3.200000e+01 : f32
    %153 = vector.broadcast %cst_60 : f32 to vector<16x1xf32>
    %154 = arith.divf %152, %153 : vector<16x1xf32>
    %155 = vector.broadcast %147 : vector<16x1xf32> to vector<16x32xf32>
    %156 = arith.subf %139, %155 : vector<16x32xf32>
    %cst_61 = arith.constant 9.99999974E-6 : f32
    %157 = vector.broadcast %cst_61 : f32 to vector<16x1xf32>
    %158 = arith.addf %154, %157 : vector<16x1xf32>
    %159 = math.rsqrt %158 : vector<16x1xf32>
    %160 = vector.broadcast %159 : vector<16x1xf32> to vector<16x32xf32>
    %161 = arith.mulf %156, %160 : vector<16x32xf32>
    %162 = vector.broadcast %141 : vector<1x32xf32> to vector<16x32xf32>
    %163 = arith.mulf %161, %162 : vector<16x32xf32>
    %164 = vector.broadcast %143 : vector<1x32xf32> to vector<16x32xf32>
    %165 = arith.addf %163, %164 : vector<16x32xf32>
    %c0_62 = arith.constant 0 : index
    %c0_63 = arith.constant 0 : index
    %166 = vector.load %arg21[%c0_62, %c0_63] : memref<16x32xf32, #tpu.memory_space<vmem>>, vector<16x32xf32>
    tpu.vector_store %arg21[%c0_62, %c0_63], %165 {strides = array<i32>} : memref<16x32xf32, #tpu.memory_space<vmem>>, vector<16x32xf32>,
    %c1_i32 = arith.constant 1 : i32
    %167 = arith.cmpi eq, %arg1, %c1_i32 : i32
    %168 = arith.extui %167 : i1 to i32
    %c0_i32_64 = arith.constant 0 : i32
    %169 = arith.cmpi ne, %168, %c0_i32_64 : i32
    scf.if %169 {
      %170 = arith.truncf %165 : vector<16x32xf32> to vector<16x32xbf16>
      %c0_65 = arith.constant 0 : index
      %c0_66 = arith.constant 0 : index
      %171 = vector.load %arg18[%c0_65, %c0_66] : memref<32x8xbf16, #tpu.memory_space<vmem>>, vector<32x8xbf16>
      %cst_67 = arith.constant dense<0.000000e+00> : vector<16x8xf32>
      %172 = tpu.matmul %170, %171, %cst_67 {dimension_numbers = #tpu.dot_dimension_numbers<[1], [0], [0], [1], [0, 0, 1, 1], [], []>} : vector<16x32xbf16>, vector<32x8xbf16>, vector<16x8xf32> -> vector<16x8xf32>
      %c0_68 = arith.constant 0 : index
      %c0_69 = arith.constant 0 : index
      %173 = vector.load %arg19[%c0_68, %c0_69] : memref<1x8xf32, #tpu.memory_space<vmem>>, vector<1x8xf32>
      %174 = vector.broadcast %173 : vector<1x8xf32> to vector<16x8xf32>
      %175 = arith.addf %172, %174 : vector<16x8xf32>
      %176 = vector.shape_cast %175 : vector<16x8xf32> to vector<2x8x8xf32>
      %c0_70 = arith.constant 0 : index
      %c0_71 = arith.constant 0 : index
      %c0_72 = arith.constant 0 : index
      %177 = vector.load %arg20[%c0_70, %c0_71, %c0_72] : memref<2x8x8xf32, #tpu.memory_space<vmem>>, vector<2x8x8xf32>
      tpu.vector_store %arg20[%c0_70, %c0_71, %c0_72], %176 {strides = array<i32>} : memref<2x8x8xf32, #tpu.memory_space<vmem>>, vector<2x8x8xf32>,
    } else {
    }
    return
  }
  func.func @transform_0(%arg0: i32, %arg1: i32) -> (i32, i32, i32) {
    %c0_i32 = arith.constant 0 : i32
    %c0_i32_0 = arith.constant 0 : i32
    %c0_i32_1 = arith.constant 0 : i32
    return %arg0, %c0_i32, %c0_i32_0 : i32, i32, i32
  }
  func.func @transform_1(%arg0: i32, %arg1: i32) -> (i32, i32) {
    %c0_i32 = arith.constant 0 : i32
    %c0_i32_0 = arith.constant 0 : i32
    %c0_i32_1 = arith.constant 0 : i32
    return %c0_i32, %c0_i32_0 : i32, i32
  }
  func.func @transform_2(%arg0: i32, %arg1: i32) -> (i32, i32) {
    %c0_i32 = arith.constant 0 : i32
    %c0_i32_0 = arith.constant 0 : i32
    %c0_i32_1 = arith.constant 0 : i32
    return %c0_i32, %c0_i32_0 : i32, i32
  }
  func.func @transform_3(%arg0: i32, %arg1: i32) -> (i32, i32) {
    %c0_i32 = arith.constant 0 : i32
    %c0_i32_0 = arith.constant 0 : i32
    %c0_i32_1 = arith.constant 0 : i32
    return %c0_i32, %c0_i32_0 : i32, i32
  }
  func.func @transform_4(%arg0: i32, %arg1: i32) -> (i32, i32, i32) {
    %c0_i32 = arith.constant 0 : i32
    %c0_i32_0 = arith.constant 0 : i32
    %c0_i32_1 = arith.constant 0 : i32
    return %arg1, %c0_i32, %c0_i32_0 : i32, i32, i32
  }
  func.func @transform_5(%arg0: i32, %arg1: i32) -> (i32, i32, i32) {
    %c0_i32 = arith.constant 0 : i32
    %c0_i32_0 = arith.constant 0 : i32
    %c0_i32_1 = arith.constant 0 : i32
    return %arg1, %c0_i32, %c0_i32_0 : i32, i32, i32
  }
  func.func @transform_6(%arg0: i32, %arg1: i32) -> (i32, i32, i32) {
    %c0_i32 = arith.constant 0 : i32
    %c0_i32_0 = arith.constant 0 : i32
    %c0_i32_1 = arith.constant 0 : i32
    return %arg1, %c0_i32, %c0_i32_0 : i32, i32, i32
  }
  func.func @transform_7(%arg0: i32, %arg1: i32) -> (i32, i32, i32) {
    %c0_i32 = arith.constant 0 : i32
    %c0_i32_0 = arith.constant 0 : i32
    %c0_i32_1 = arith.constant 0 : i32
    return %arg1, %c0_i32, %c0_i32_0 : i32, i32, i32
  }
  func.func @transform_8(%arg0: i32, %arg1: i32) -> (i32, i32, i32) {
    %c0_i32 = arith.constant 0 : i32
    %c0_i32_0 = arith.constant 0 : i32
    %c0_i32_1 = arith.constant 0 : i32
    return %arg1, %c0_i32, %c0_i32_0 : i32, i32, i32
  }
  func.func @transform_9(%arg0: i32, %arg1: i32) -> (i32, i32, i32) {
    %c0_i32 = arith.constant 0 : i32
    %c0_i32_0 = arith.constant 0 : i32
    %c0_i32_1 = arith.constant 0 : i32
    return %arg1, %c0_i32, %c0_i32_0 : i32, i32, i32
  }
  func.func @transform_10(%arg0: i32, %arg1: i32) -> (i32, i32, i32) {
    %c0_i32 = arith.constant 0 : i32
    %c0_i32_0 = arith.constant 0 : i32
    %c0_i32_1 = arith.constant 0 : i32
    return %arg1, %c0_i32, %c0_i32_0 : i32, i32, i32
  }
  func.func @transform_11(%arg0: i32, %arg1: i32) -> (i32, i32, i32) {
    %c0_i32 = arith.constant 0 : i32
    %c0_i32_0 = arith.constant 0 : i32
    %c0_i32_1 = arith.constant 0 : i32
    return %arg1, %c0_i32, %c0_i32_0 : i32, i32, i32
  }
  func.func @transform_12(%arg0: i32, %arg1: i32) -> (i32, i32, i32) {
    %c0_i32 = arith.constant 0 : i32
    %c0_i32_0 = arith.constant 0 : i32
    %c0_i32_1 = arith.constant 0 : i32
    return %arg1, %c0_i32, %c0_i32_0 : i32, i32, i32
  }
  func.func @transform_13(%arg0: i32, %arg1: i32) -> (i32, i32, i32) {
    %c0_i32 = arith.constant 0 : i32
    %c0_i32_0 = arith.constant 0 : i32
    %c0_i32_1 = arith.constant 0 : i32
    return %arg1, %c0_i32, %c0_i32_0 : i32, i32, i32
  }
  func.func @transform_14(%arg0: i32, %arg1: i32) -> (i32, i32, i32) {
    %c0_i32 = arith.constant 0 : i32
    %c0_i32_0 = arith.constant 0 : i32
    %c0_i32_1 = arith.constant 0 : i32
    return %arg1, %c0_i32, %c0_i32_0 : i32, i32, i32
  }
  func.func @transform_15(%arg0: i32, %arg1: i32) -> (i32, i32, i32) {
    %c0_i32 = arith.constant 0 : i32
    %c0_i32_0 = arith.constant 0 : i32
    %c0_i32_1 = arith.constant 0 : i32
    return %arg1, %c0_i32, %c0_i32_0 : i32, i32, i32
  }
  func.func @transform_16(%arg0: i32, %arg1: i32) -> (i32, i32) {
    %c0_i32 = arith.constant 0 : i32
    %c0_i32_0 = arith.constant 0 : i32
    %c0_i32_1 = arith.constant 0 : i32
    return %c0_i32, %c0_i32_0 : i32, i32
  }
  func.func @transform_17(%arg0: i32, %arg1: i32) -> (i32, i32) {
    %c0_i32 = arith.constant 0 : i32
    %c0_i32_0 = arith.constant 0 : i32
    %c0_i32_1 = arith.constant 0 : i32
    return %c0_i32, %c0_i32_0 : i32, i32
  }
  func.func @transform_18(%arg0: i32, %arg1: i32) -> (i32, i32, i32) {
    %c0_i32 = arith.constant 0 : i32
    %c0_i32_0 = arith.constant 0 : i32
    %c0_i32_1 = arith.constant 0 : i32
    return %arg0, %c0_i32, %c0_i32_0 : i32, i32, i32
  }
}

</mosaic_0001>

<llo_original>
// kernel: tpu_custom_call.1
$region0: #{tpu_custom_call.1}
  #allocation0 [shape = 'u32[]', space=smem, size = 0x4, offset = 0x4, fixed_abs, tag = 'smem constant byte address 0x4 - core index']
  #allocation1 [shape = 'u32[72,128]{1,0:T(1,128)}', space=vmem, size = 0x9000, scoped, tag = 'internal scratch']
  #allocation2 [shape = 'f32[16,32]{1,0:T(8,128)}', space=vmem, size = 0x2000, scoped, tag = 'scratch operand']
  %s0 = inlined_call_operand.vmem [shape: f32[2,8,16], index: 0, kind: input, shape index: {}]
  %s1 = inlined_call_operand.hbm [shape: f32[8,32], index: 1, kind: input, shape index: {}]
  %s2 = inlined_call_operand.hbm [shape: bf16[16,32], index: 2, kind: input, shape index: {}]
  %s3 = inlined_call_operand.hbm [shape: f32[1,32], index: 3, kind: input, shape index: {}]
  %s4 = inlined_call_operand.hbm [shape: bf16[2,32,96], index: 4, kind: input, shape index: {}]
  %s5 = inlined_call_operand.vmem [shape: f32[2,1,96], index: 5, kind: input, shape index: {}]
  %s6 = inlined_call_operand.hbm [shape: bf16[2,32,32], index: 6, kind: input, shape index: {}]
  %s7 = inlined_call_operand.vmem [shape: f32[2,1,32], index: 7, kind: input, shape index: {}]
  %s8 = inlined_call_operand.vmem [shape: f32[2,1,32], index: 8, kind: input, shape index: {}]
  %s9 = inlined_call_operand.vmem [shape: f32[2,1,32], index: 9, kind: input, shape index: {}]
  %s10 = inlined_call_operand.hbm [shape: bf16[2,32,32], index: 10, kind: input, shape index: {}]
  %s11 = inlined_call_operand.vmem [shape: f32[2,1,32], index: 11, kind: input, shape index: {}]
  %s12 = inlined_call_operand.hbm [shape: bf16[2,32,32], index: 12, kind: input, shape index: {}]
  %s13 = inlined_call_operand.vmem [shape: f32[2,1,32], index: 13, kind: input, shape index: {}]
  %s14 = inlined_call_operand.hbm [shape: f32[2,1,32], index: 14, kind: input, shape index: {}]
  %s15 = inlined_call_operand.vmem [shape: f32[2,1,32], index: 15, kind: input, shape index: {}]
  %s16 = inlined_call_operand.vmem [shape: bf16[32,8], index: 16, kind: input, shape index: {}]
  %s17 = inlined_call_operand.vmem [shape: f32[1,8], index: 17, kind: input, shape index: {}]
  %s18 = inlined_call_operand.hbm [shape: f32[2,8,8], index: 18, kind: output, shape index: {}]
  %s19 = sld [smem:[#allocation0]]
  $region145: #{tpu_custom_call.1} parent=0
    _
  %s21 = ssub.s32 1, %s19
  %s22 = scalar_select 0, %s21, %s19
  $region1: #{tpu_custom_call.1} parent=0
    #allocation3 [shape = 'u8[4096]{0}', space=vmem, size = 0x1000, scoped, tag = 'input window, operand 1, single buffered']
    #allocation4 [shape = 's32[2]{0}', space=sflag, size = 0x8, scoped, tag = 'scoped memory for tpu_custom_call.1']
    #allocation5 [shape = 's32[2]{0}', space=sflag, size = 0x8, scoped, tag = 'scoped memory for tpu_custom_call.1']
    #allocation6 [shape = 'u8[4096]{0}', space=vmem, size = 0x1000, scoped, tag = 'input window, operand 2, single buffered']
    #allocation7 [shape = 's32[1]{0}', space=sflag, size = 0x4, scoped, tag = 'scoped memory for tpu_custom_call.1']
    #allocation8 [shape = 'u8[512]{0}', space=vmem, size = 0x400, scoped, tag = 'input window, operand 3, single buffered']
    #allocation9 [shape = 'u8[16384]{0}', space=vmem, size = 0x4000, scoped, tag = 'input window, operand 4']
    #allocation10 [shape = 's32[2]{0}', space=sflag, size = 0x8, scoped, tag = 'scoped memory for tpu_custom_call.1']
    #allocation11 [shape = 'u8[16384]{0}', space=vmem, size = 0x4000, scoped, tag = 'input window, operand 6']
    #allocation12 [shape = 'u8[16384]{0}', space=vmem, size = 0x4000, scoped, tag = 'input window, operand 10']
    #allocation13 [shape = 's32[2]{0}', space=sflag, size = 0x8, scoped, tag = 'scoped memory for tpu_custom_call.1']
    #allocation14 [shape = 'u8[16384]{0}', space=vmem, size = 0x4000, scoped, tag = 'input window, operand 12']
    #allocation15 [shape = 'u8[1024]{0}', space=vmem, size = 0x400, scoped, tag = 'input window, operand 14']
    #allocation16 [shape = 's32[2]{0}', space=sflag, size = 0x8, scoped, tag = 'scoped memory for tpu_custom_call.1']
    #allocation17 [shape = 'u8[8192]{0}', space=vmem, size = 0x2000, scoped, tag = 'output window, operand 0, single buffered']
    %23 = vsyncpa [#allocation4], 0
    %24 = vsyncpa [#allocation7], 0
    %25 = vsyncpa [#allocation10], 0
    %s26 = scalar_lea.sflag [#allocation10], 1
    %27 = vsyncpa %s26, 0
    %28 = vsyncpa [#allocation13], 0
    %s29 = scalar_lea.sflag [#allocation13], 1
    %30 = vsyncpa %s29, 0
    %31 = vsyncpa [#allocation16], 0
    %s32 = scalar_lea.sflag [#allocation16], 1
    %33 = vsyncpa %s32, 0
    %34 = vsyncpa [#allocation5], 0
    loop: start=0, step=1, limit=4
    $region2: #{tpu_custom_call.1} parent=1 // loop_pre_header
      _
    $region3: #{tpu_custom_call.1} parent=1 // loop_header
      %s36 = sphi 0, %s40
      %p37 = scmp.ge.s32.totalorder %s36, 4
      %s43 = sphi 0, %s55
      %s44 = sphi 0, %s51
      %s45 = sphi 0, %s43
      %s46 = sphi 0, %s44
      %s47 = sphi 0, %s45
      %s48 = sphi 0, %s46
      %s58 = sphi 0, %s60
      %s61 = sphi 0, %s58
      %s62 = sphi 0, %s61
      %s78 = sphi 0, %s62
      %s82 = sphi 0, %s82
      %s84 = sphi 0, %s82
      %s85 = sphi 0, %s84
      %s99 = sphi 0, %s85
      %s103 = sphi 0, %s103
      %s105 = sphi 0, %s103
      %s106 = sphi 0, %s105
      %s120 = sphi 0, %s106
      %s124 = sphi 0, %s124
      %s126 = sphi 0, %s124
      %s127 = sphi 0, %s126
      %s141 = sphi 0, %s127
      %s147 = sphi 0, %s149
      %s150 = sphi 0, %s147
      %s151 = sphi 0, %s150
      %s167 = sphi 0, %s151
      %s173 = sphi 0, %s175
      %s176 = sphi 0, %s173
      %s177 = sphi 0, %s176
      %s193 = sphi 0, %s177
      %s199 = sphi 0, %s201
      %s202 = sphi 0, %s199
      %s203 = sphi 0, %s202
      %s219 = sphi 0, %s203
      %s225 = sphi 0, %s227
      %s228 = sphi 0, %s225
      %s229 = sphi 0, %s228
      %s245 = sphi 0, %s229
      %s251 = sphi 0, %s253
      %s254 = sphi 0, %s251
      %s255 = sphi 0, %s254
      %s271 = sphi 0, %s255
      %s277 = sphi 0, %s279
      %s280 = sphi 0, %s277
      %s281 = sphi 0, %s280
      %s297 = sphi 0, %s281
      %s303 = sphi 0, %s305
      %s306 = sphi 0, %s303
      %s307 = sphi 0, %s306
      %s323 = sphi 0, %s307
      %s329 = sphi 0, %s331
      %s332 = sphi 0, %s329
      %s333 = sphi 0, %s332
      %s349 = sphi 0, %s333
      %s355 = sphi 0, %s357
      %s358 = sphi 0, %s355
      %s359 = sphi 0, %s358
      %s375 = sphi 0, %s359
      %s381 = sphi 0, %s383
      %s384 = sphi 0, %s381
      %s385 = sphi 0, %s384
      %s401 = sphi 0, %s385
      %s407 = sphi 0, %s409
      %s410 = sphi 0, %s407
      %s411 = sphi 0, %s410
      %s427 = sphi 0, %s411
      %s433 = sphi 0, %s435
      %s436 = sphi 0, %s433
      %s437 = sphi 0, %s436
      %s453 = sphi 0, %s437
      %s457 = sphi 0, %s457
      %s459 = sphi 0, %s457
      %s460 = sphi 0, %s459
      %s474 = sphi 0, %s460
      %s478 = sphi 0, %s478
      %s480 = sphi 0, %s478
      %s481 = sphi 0, %s480
      %s495 = sphi 0, %s481
      %s501 = sphi 0, %s503
      %s504 = sphi 0, %s501
      %s505 = sphi 0, %s504
      %s521 = sphi 0, %s505
    $region4: #{tpu_custom_call.1} parent=1 // loop_header_branch
      %39 = sbr.rel (%p37) target = $region8
    $region5: #{tpu_custom_call.1} parent=1 // loop_body
      %s41 = ssub.s32 %s36, 1
      %s42 = ssub.s32 %s36, 2
      %s49 = sadd.s32 1, %s44
      %p50 = scmp.ge.s32.totalorder %s49, 2
      %s51 = scalar_select %p50, 0, %s49
      %s52 = sadd.s32 1, %s43
      %s53 = scalar_select %p50, %s52, %s43
      %p54 = scmp.ge.s32.totalorder %s53, 1
      %s55 = scalar_select %p54, 0, %s53
      %s56 = ssub.s32 %s43, %s55
      %p57 = scmp.eq.s32.totalorder %s56, 0
      %s59 = sadd.s32 %s58, 1
      %s60 = scalar_select %p57, %s58, %s59
      %p63 = pneg %p57
      %p64 = scmp.eq.s32.totalorder %s36, 1
      %p65 = por %p63, %p64
      %p66 = scmp.ne.s32.totalorder %s58, %s61
      %p67 = scmp.eq.s32.totalorder %s36, 0
      %p68 = por %p66, %p67
      %p69 = scmp.ne.s32.totalorder %s58, %s61
      %p70 = scmp.eq.s32.totalorder %s41, 1
      %p71 = por %p69, %p70
      %p72 = scmp.ne.s32.totalorder %s61, %s62
      %p73 = scmp.eq.s32.totalorder %s41, 0
      %p74 = por %p72, %p73
      %p75 = scmp.ne.s32.totalorder %s61, %s62
      %p76 = scmp.eq.s32.totalorder %s42, 1
      %p77 = por %p75, %p76
      %p79 = scmp.ne.s32.totalorder %s62, %s78
      %p80 = scmp.eq.s32.totalorder %s42, 0
      %p81 = por %p79, %p80
      %s83 = sadd.s32 %s82, 1
      %p86 = scmp.eq.s32.totalorder %s36, 1
      %p87 = scmp.ne.s32.totalorder %s82, %s84
      %p88 = scmp.eq.s32.totalorder %s36, 0
      %p89 = por %p87, %p88
      %p90 = scmp.ne.s32.totalorder %s82, %s84
      %p91 = scmp.eq.s32.totalorder %s41, 1
      %p92 = por %p90, %p91
      %p93 = scmp.ne.s32.totalorder %s84, %s85
      %p94 = scmp.eq.s32.totalorder %s41, 0
      %p95 = por %p93, %p94
      %p96 = scmp.ne.s32.totalorder %s84, %s85
      %p97 = scmp.eq.s32.totalorder %s42, 1
      %p98 = por %p96, %p97
      %p100 = scmp.ne.s32.totalorder %s85, %s99
      %p101 = scmp.eq.s32.totalorder %s42, 0
      %p102 = por %p100, %p101
      %s104 = sadd.s32 %s103, 1
      %p107 = scmp.eq.s32.totalorder %s36, 1
      %p108 = scmp.ne.s32.totalorder %s103, %s105
      %p109 = scmp.eq.s32.totalorder %s36, 0
      %p110 = por %p108, %p109
      %p111 = scmp.ne.s32.totalorder %s103, %s105
      %p112 = scmp.eq.s32.totalorder %s41, 1
      %p113 = por %p111, %p112
      %p114 = scmp.ne.s32.totalorder %s105, %s106
      %p115 = scmp.eq.s32.totalorder %s41, 0
      %p116 = por %p114, %p115
      %p117 = scmp.ne.s32.totalorder %s105, %s106
      %p118 = scmp.eq.s32.totalorder %s42, 1
      %p119 = por %p117, %p118
      %p121 = scmp.ne.s32.totalorder %s106, %s120
      %p122 = scmp.eq.s32.totalorder %s42, 0
      %p123 = por %p121, %p122
      %s125 = sadd.s32 %s124, 1
      %p128 = scmp.eq.s32.totalorder %s36, 1
      %p129 = scmp.ne.s32.totalorder %s124, %s126
      %p130 = scmp.eq.s32.totalorder %s36, 0
      %p131 = por %p129, %p130
      %p132 = scmp.ne.s32.totalorder %s124, %s126
      %p133 = scmp.eq.s32.totalorder %s41, 1
      %p134 = por %p132, %p133
      %p135 = scmp.ne.s32.totalorder %s126, %s127
      %p136 = scmp.eq.s32.totalorder %s41, 0
      %p137 = por %p135, %p136
      %p138 = scmp.ne.s32.totalorder %s126, %s127
      %p139 = scmp.eq.s32.totalorder %s42, 1
      %p140 = por %p138, %p139
      %p142 = scmp.ne.s32.totalorder %s127, %s141
      %p143 = scmp.eq.s32.totalorder %s42, 0
      %p144 = por %p142, %p143
      %s145 = ssub.s32 %s44, %s51
      %p146 = scmp.eq.s32.totalorder %s145, 0
      %s148 = sadd.s32 %s147, 1
      %s149 = scalar_select %p146, %s147, %s148
      %p152 = pneg %p146
      %p153 = scmp.eq.s32.totalorder %s36, 1
      %p154 = por %p152, %p153
      %p155 = scmp.ne.s32.totalorder %s147, %s150
      %p156 = scmp.eq.s32.totalorder %s36, 0
      %p157 = por %p155, %p156
      %p158 = scmp.ne.s32.totalorder %s147, %s150
      %p159 = scmp.eq.s32.totalorder %s41, 1
      %p160 = por %p158, %p159
      %p161 = scmp.ne.s32.totalorder %s150, %s151
      %p162 = scmp.eq.s32.totalorder %s41, 0
      %p163 = por %p161, %p162
      %p164 = scmp.ne.s32.totalorder %s150, %s151
      %p165 = scmp.eq.s32.totalorder %s42, 1
      %p166 = por %p164, %p165
      %p168 = scmp.ne.s32.totalorder %s151, %s167
      %p169 = scmp.eq.s32.totalorder %s42, 0
      %p170 = por %p168, %p169
      %s171 = ssub.s32 %s44, %s51
      %p172 = scmp.eq.s32.totalorder %s171, 0
      %s174 = sadd.s32 %s173, 1
      %s175 = scalar_select %p172, %s173, %s174
      %p178 = pneg %p172
      %p179 = scmp.eq.s32.totalorder %s36, 1
      %p180 = por %p178, %p179
      %p181 = scmp.ne.s32.totalorder %s173, %s176
      %p182 = scmp.eq.s32.totalorder %s36, 0
      %p183 = por %p181, %p182
      %p184 = scmp.ne.s32.totalorder %s173, %s176
      %p185 = scmp.eq.s32.totalorder %s41, 1
      %p186 = por %p184, %p185
      %p187 = scmp.ne.s32.totalorder %s176, %s177
      %p188 = scmp.eq.s32.totalorder %s41, 0
      %p189 = por %p187, %p188
      %p190 = scmp.ne.s32.totalorder %s176, %s177
      %p191 = scmp.eq.s32.totalorder %s42, 1
      %p192 = por %p190, %p191
      %p194 = scmp.ne.s32.totalorder %s177, %s193
      %p195 = scmp.eq.s32.totalorder %s42, 0
      %p196 = por %p194, %p195
      %s197 = ssub.s32 %s44, %s51
      %p198 = scmp.eq.s32.totalorder %s197, 0
      %s200 = sadd.s32 %s199, 1
      %s201 = scalar_select %p198, %s199, %s200
      %p204 = pneg %p198
      %p205 = scmp.eq.s32.totalorder %s36, 1
      %p206 = por %p204, %p205
      %p207 = scmp.ne.s32.totalorder %s199, %s202
      %p208 = scmp.eq.s32.totalorder %s36, 0
      %p209 = por %p207, %p208
      %p210 = scmp.ne.s32.totalorder %s199, %s202
      %p211 = scmp.eq.s32.totalorder %s41, 1
      %p212 = por %p210, %p211
      %p213 = scmp.ne.s32.totalorder %s202, %s203
      %p214 = scmp.eq.s32.totalorder %s41, 0
      %p215 = por %p213, %p214
      %p216 = scmp.ne.s32.totalorder %s202, %s203
      %p217 = scmp.eq.s32.totalorder %s42, 1
      %p218 = por %p216, %p217
      %p220 = scmp.ne.s32.totalorder %s203, %s219
      %p221 = scmp.eq.s32.totalorder %s42, 0
      %p222 = por %p220, %p221
      %s223 = ssub.s32 %s44, %s51
      %p224 = scmp.eq.s32.totalorder %s223, 0
      %s226 = sadd.s32 %s225, 1
      %s227 = scalar_select %p224, %s225, %s226
      %p230 = pneg %p224
      %p231 = scmp.eq.s32.totalorder %s36, 1
      %p232 = por %p230, %p231
      %p233 = scmp.ne.s32.totalorder %s225, %s228
      %p234 = scmp.eq.s32.totalorder %s36, 0
      %p235 = por %p233, %p234
      %p236 = scmp.ne.s32.totalorder %s225, %s228
      %p237 = scmp.eq.s32.totalorder %s41, 1
      %p238 = por %p236, %p237
      %p239 = scmp.ne.s32.totalorder %s228, %s229
      %p240 = scmp.eq.s32.totalorder %s41, 0
      %p241 = por %p239, %p240
      %p242 = scmp.ne.s32.totalorder %s228, %s229
      %p243 = scmp.eq.s32.totalorder %s42, 1
      %p244 = por %p242, %p243
      %p246 = scmp.ne.s32.totalorder %s229, %s245
      %p247 = scmp.eq.s32.totalorder %s42, 0
      %p248 = por %p246, %p247
      %s249 = ssub.s32 %s44, %s51
      %p250 = scmp.eq.s32.totalorder %s249, 0
      %s252 = sadd.s32 %s251, 1
      %s253 = scalar_select %p250, %s251, %s252
      %p256 = pneg %p250
      %p257 = scmp.eq.s32.totalorder %s36, 1
      %p258 = por %p256, %p257
      %p259 = scmp.ne.s32.totalorder %s251, %s254
      %p260 = scmp.eq.s32.totalorder %s36, 0
      %p261 = por %p259, %p260
      %p262 = scmp.ne.s32.totalorder %s251, %s254
      %p263 = scmp.eq.s32.totalorder %s41, 1
      %p264 = por %p262, %p263
      %p265 = scmp.ne.s32.totalorder %s254, %s255
      %p266 = scmp.eq.s32.totalorder %s41, 0
      %p267 = por %p265, %p266
      %p268 = scmp.ne.s32.totalorder %s254, %s255
      %p269 = scmp.eq.s32.totalorder %s42, 1
      %p270 = por %p268, %p269
      %p272 = scmp.ne.s32.totalorder %s255, %s271
      %p273 = scmp.eq.s32.totalorder %s42, 0
      %p274 = por %p272, %p273
      %s275 = ssub.s32 %s44, %s51
      %p276 = scmp.eq.s32.totalorder %s275, 0
      %s278 = sadd.s32 %s277, 1
      %s279 = scalar_select %p276, %s277, %s278
      %p282 = pneg %p276
      %p283 = scmp.eq.s32.totalorder %s36, 1
      %p284 = por %p282, %p283
      %p285 = scmp.ne.s32.totalorder %s277, %s280
      %p286 = scmp.eq.s32.totalorder %s36, 0
      %p287 = por %p285, %p286
      %p288 = scmp.ne.s32.totalorder %s277, %s280
      %p289 = scmp.eq.s32.totalorder %s41, 1
      %p290 = por %p288, %p289
      %p291 = scmp.ne.s32.totalorder %s280, %s281
      %p292 = scmp.eq.s32.totalorder %s41, 0
      %p293 = por %p291, %p292
      %p294 = scmp.ne.s32.totalorder %s280, %s281
      %p295 = scmp.eq.s32.totalorder %s42, 1
      %p296 = por %p294, %p295
      %p298 = scmp.ne.s32.totalorder %s281, %s297
      %p299 = scmp.eq.s32.totalorder %s42, 0
      %p300 = por %p298, %p299
      %s301 = ssub.s32 %s44, %s51
      %p302 = scmp.eq.s32.totalorder %s301, 0
      %s304 = sadd.s32 %s303, 1
      %s305 = scalar_select %p302, %s303, %s304
      %p308 = pneg %p302
      %p309 = scmp.eq.s32.totalorder %s36, 1
      %p310 = por %p308, %p309
      %p311 = scmp.ne.s32.totalorder %s303, %s306
      %p312 = scmp.eq.s32.totalorder %s36, 0
      %p313 = por %p311, %p312
      %p314 = scmp.ne.s32.totalorder %s303, %s306
      %p315 = scmp.eq.s32.totalorder %s41, 1
      %p316 = por %p314, %p315
      %p317 = scmp.ne.s32.totalorder %s306, %s307
      %p318 = scmp.eq.s32.totalorder %s41, 0
      %p319 = por %p317, %p318
      %p320 = scmp.ne.s32.totalorder %s306, %s307
      %p321 = scmp.eq.s32.totalorder %s42, 1
      %p322 = por %p320, %p321
      %p324 = scmp.ne.s32.totalorder %s307, %s323
      %p325 = scmp.eq.s32.totalorder %s42, 0
      %p326 = por %p324, %p325
      %s327 = ssub.s32 %s44, %s51
      %p328 = scmp.eq.s32.totalorder %s327, 0
      %s330 = sadd.s32 %s329, 1
      %s331 = scalar_select %p328, %s329, %s330
      %p334 = pneg %p328
      %p335 = scmp.eq.s32.totalorder %s36, 1
      %p336 = por %p334, %p335
      %p337 = scmp.ne.s32.totalorder %s329, %s332
      %p338 = scmp.eq.s32.totalorder %s36, 0
      %p339 = por %p337, %p338
      %p340 = scmp.ne.s32.totalorder %s329, %s332
      %p341 = scmp.eq.s32.totalorder %s41, 1
      %p342 = por %p340, %p341
      %p343 = scmp.ne.s32.totalorder %s332, %s333
      %p344 = scmp.eq.s32.totalorder %s41, 0
      %p345 = por %p343, %p344
      %p346 = scmp.ne.s32.totalorder %s332, %s333
      %p347 = scmp.eq.s32.totalorder %s42, 1
      %p348 = por %p346, %p347
      %p350 = scmp.ne.s32.totalorder %s333, %s349
      %p351 = scmp.eq.s32.totalorder %s42, 0
      %p352 = por %p350, %p351
      %s353 = ssub.s32 %s44, %s51
      %p354 = scmp.eq.s32.totalorder %s353, 0
      %s356 = sadd.s32 %s355, 1
      %s357 = scalar_select %p354, %s355, %s356
      %p360 = pneg %p354
      %p361 = scmp.eq.s32.totalorder %s36, 1
      %p362 = por %p360, %p361
      %p363 = scmp.ne.s32.totalorder %s355, %s358
      %p364 = scmp.eq.s32.totalorder %s36, 0
      %p365 = por %p363, %p364
      %p366 = scmp.ne.s32.totalorder %s355, %s358
      %p367 = scmp.eq.s32.totalorder %s41, 1
      %p368 = por %p366, %p367
      %p369 = scmp.ne.s32.totalorder %s358, %s359
      %p370 = scmp.eq.s32.totalorder %s41, 0
      %p371 = por %p369, %p370
      %p372 = scmp.ne.s32.totalorder %s358, %s359
      %p373 = scmp.eq.s32.totalorder %s42, 1
      %p374 = por %p372, %p373
      %p376 = scmp.ne.s32.totalorder %s359, %s375
      %p377 = scmp.eq.s32.totalorder %s42, 0
      %p378 = por %p376, %p377
      %s379 = ssub.s32 %s44, %s51
      %p380 = scmp.eq.s32.totalorder %s379, 0
      %s382 = sadd.s32 %s381, 1
      %s383 = scalar_select %p380, %s381, %s382
      %p386 = pneg %p380
      %p387 = scmp.eq.s32.totalorder %s36, 1
      %p388 = por %p386, %p387
      %p389 = scmp.ne.s32.totalorder %s381, %s384
      %p390 = scmp.eq.s32.totalorder %s36, 0
      %p391 = por %p389, %p390
      %p392 = scmp.ne.s32.totalorder %s381, %s384
      %p393 = scmp.eq.s32.totalorder %s41, 1
      %p394 = por %p392, %p393
      %p395 = scmp.ne.s32.totalorder %s384, %s385
      %p396 = scmp.eq.s32.totalorder %s41, 0
      %p397 = por %p395, %p396
      %p398 = scmp.ne.s32.totalorder %s384, %s385
      %p399 = scmp.eq.s32.totalorder %s42, 1
      %p400 = por %p398, %p399
      %p402 = scmp.ne.s32.totalorder %s385, %s401
      %p403 = scmp.eq.s32.totalorder %s42, 0
      %p404 = por %p402, %p403
      %s405 = ssub.s32 %s44, %s51
      %p406 = scmp.eq.s32.totalorder %s405, 0
      %s408 = sadd.s32 %s407, 1
      %s409 = scalar_select %p406, %s407, %s408
      %p412 = pneg %p406
      %p413 = scmp.eq.s32.totalorder %s36, 1
      %p414 = por %p412, %p413
      %p415 = scmp.ne.s32.totalorder %s407, %s410
      %p416 = scmp.eq.s32.totalorder %s36, 0
      %p417 = por %p415, %p416
      %p418 = scmp.ne.s32.totalorder %s407, %s410
      %p419 = scmp.eq.s32.totalorder %s41, 1
      %p420 = por %p418, %p419
      %p421 = scmp.ne.s32.totalorder %s410, %s411
      %p422 = scmp.eq.s32.totalorder %s41, 0
      %p423 = por %p421, %p422
      %p424 = scmp.ne.s32.totalorder %s410, %s411
      %p425 = scmp.eq.s32.totalorder %s42, 1
      %p426 = por %p424, %p425
      %p428 = scmp.ne.s32.totalorder %s411, %s427
      %p429 = scmp.eq.s32.totalorder %s42, 0
      %p430 = por %p428, %p429
      %s431 = ssub.s32 %s44, %s51
      %p432 = scmp.eq.s32.totalorder %s431, 0
      %s434 = sadd.s32 %s433, 1
      %s435 = scalar_select %p432, %s433, %s434
      %p438 = pneg %p432
      %p439 = scmp.eq.s32.totalorder %s36, 1
      %p440 = por %p438, %p439
      %p441 = scmp.ne.s32.totalorder %s433, %s436
      %p442 = scmp.eq.s32.totalorder %s36, 0
      %p443 = por %p441, %p442
      %p444 = scmp.ne.s32.totalorder %s433, %s436
      %p445 = scmp.eq.s32.totalorder %s41, 1
      %p446 = por %p444, %p445
      %p447 = scmp.ne.s32.totalorder %s436, %s437
      %p448 = scmp.eq.s32.totalorder %s41, 0
      %p449 = por %p447, %p448
      %p450 = scmp.ne.s32.totalorder %s436, %s437
      %p451 = scmp.eq.s32.totalorder %s42, 1
      %p452 = por %p450, %p451
      %p454 = scmp.ne.s32.totalorder %s437, %s453
      %p455 = scmp.eq.s32.totalorder %s42, 0
      %p456 = por %p454, %p455
      %s458 = sadd.s32 %s457, 1
      %p461 = scmp.eq.s32.totalorder %s36, 1
      %p462 = scmp.ne.s32.totalorder %s457, %s459
      %p463 = scmp.eq.s32.totalorder %s36, 0
      %p464 = por %p462, %p463
      %p465 = scmp.ne.s32.totalorder %s457, %s459
      %p466 = scmp.eq.s32.totalorder %s41, 1
      %p467 = por %p465, %p466
      %p468 = scmp.ne.s32.totalorder %s459, %s460
      %p469 = scmp.eq.s32.totalorder %s41, 0
      %p470 = por %p468, %p469
      %p471 = scmp.ne.s32.totalorder %s459, %s460
      %p472 = scmp.eq.s32.totalorder %s42, 1
      %p473 = por %p471, %p472
      %p475 = scmp.ne.s32.totalorder %s460, %s474
      %p476 = scmp.eq.s32.totalorder %s42, 0
      %p477 = por %p475, %p476
      %s479 = sadd.s32 %s478, 1
      %p482 = scmp.eq.s32.totalorder %s36, 1
      %p483 = scmp.ne.s32.totalorder %s478, %s480
      %p484 = scmp.eq.s32.totalorder %s36, 0
      %p485 = por %p483, %p484
      %p486 = scmp.ne.s32.totalorder %s478, %s480
      %p487 = scmp.eq.s32.totalorder %s41, 1
      %p488 = por %p486, %p487
      %p489 = scmp.ne.s32.totalorder %s480, %s481
      %p490 = scmp.eq.s32.totalorder %s41, 0
      %p491 = por %p489, %p490
      %p492 = scmp.ne.s32.totalorder %s480, %s481
      %p493 = scmp.eq.s32.totalorder %s42, 1
      %p494 = por %p492, %p493
      %p496 = scmp.ne.s32.totalorder %s481, %s495
      %p497 = scmp.eq.s32.totalorder %s42, 0
      %p498 = por %p496, %p497
      %s499 = ssub.s32 %s43, %s55
      %p500 = scmp.eq.s32.totalorder %s499, 0
      %s502 = sadd.s32 %s501, 1
      %s503 = scalar_select %p500, %s501, %s502
      %p506 = pneg %p500
      %p507 = scmp.eq.s32.totalorder %s36, 1
      %p508 = por %p506, %p507
      %p509 = scmp.ne.s32.totalorder %s501, %s504
      %p510 = scmp.eq.s32.totalorder %s36, 0
      %p511 = por %p509, %p510
      %p512 = scmp.ne.s32.totalorder %s501, %s504
      %p513 = scmp.eq.s32.totalorder %s41, 1
      %p514 = por %p512, %p513
      %p515 = scmp.ne.s32.totalorder %s504, %s505
      %p516 = scmp.eq.s32.totalorder %s41, 0
      %p517 = por %p515, %p516
      %p518 = scmp.ne.s32.totalorder %s504, %s505
      %p519 = scmp.eq.s32.totalorder %s42, 1
      %p520 = por %p518, %p519
      %p522 = scmp.ne.s32.totalorder %s505, %s521
      %p523 = scmp.eq.s32.totalorder %s42, 0
      %p524 = por %p522, %p523
      %p525 = scmp.le.s32.totalorder 1, %s36
      %p526 = scmp.lt.s32.totalorder %s36, 3
      %p527 = pnand %p525, %p526
      %p528 = pneg %p527
      // Predicated region
      $region9: #{tpu_custom_call.1} parent=5 // pred_check
        _
      $region10: #{tpu_custom_call.1} parent=5 // pred_check_branch
        %530 = sbr.rel (%p527) target = $region12
      $region11: #{tpu_custom_call.1} parent=5 // pred_region
        %s531 = ssub.s32 %s36, 1
        // Predicated region
        $region13: #{tpu_custom_call.1} parent=11 // pred_check
          %p532 = pneg %p74
        $region14: #{tpu_custom_call.1} parent=11 // pred_check_branch
          %534 = sbr.rel (%p532) target = $region16
        $region15: #{tpu_custom_call.1} parent=11 // pred_region
          %s535 = smul.u32 2, %s45
          %p536 = scmp.lt.s32.totalorder %s535, 1
          %s537 = scalar_select %p536, %s535, 1
          %s538 = smul.addr %s537, 8
          %s539 = scalar_lea.vmem %s0, %s538
          %s540 = smul.u32 2, %s45
        $region16: #{tpu_custom_call.1} parent=11 // pred_fallthru
          _
        // Predicated region
        $region17: #{tpu_custom_call.1} parent=11 // pred_check
          %p541 = pneg %p95
        $region18: #{tpu_custom_call.1} parent=11 // pred_check_branch
          %543 = sbr.rel (%p541) target = $region20
        $region19: #{tpu_custom_call.1} parent=11 // pred_region
          %545 = vsyncadd [#allocation4], 0
          %s547 = sshll.u32 %s1, 4
          %s548 = int_to_ptr.hbm [resolvable:$true] %s547
          %s549 = sshll.u32 [#allocation3], 4
          %s550 = int_to_ptr.vmem [resolvable:$true] %s549
          %552 = dma.hbm_to_vmem [thread:$0]  %s548, 128, %s550, [#allocation4]
        $region20: #{tpu_custom_call.1} parent=11 // pred_fallthru
          _
        // Predicated region
        $region21: #{tpu_custom_call.1} parent=11 // pred_check
          %p553 = pneg %p116
        $region22: #{tpu_custom_call.1} parent=11 // pred_check_branch
          %555 = sbr.rel (%p553) target = $region24
        $region23: #{tpu_custom_call.1} parent=11 // pred_region
          %557 = vsyncadd [#allocation7], 0
          %s558 = sshll.u32 %s2, 4
          %s559 = int_to_ptr.hbm [resolvable:$true] %s558
          %s560 = sshll.u32 [#allocation6], 4
          %s561 = int_to_ptr.vmem [resolvable:$true] %s560
          %566 = dma.hbm_to_vmem [thread:$0]  %s559, 128, %s561, [#allocation7], 64, 64, 4
        $region24: #{tpu_custom_call.1} parent=11 // pred_fallthru
          _
        // Predicated region
        $region25: #{tpu_custom_call.1} parent=11 // pred_check
          %p567 = pneg %p137
        $region26: #{tpu_custom_call.1} parent=11 // pred_check_branch
          %569 = sbr.rel (%p567) target = $region28
        $region27: #{tpu_custom_call.1} parent=11 // pred_region
          %571 = vsyncadd [#allocation7], 0
          %s573 = sshll.u32 %s3, 4
          %s574 = int_to_ptr.hbm [resolvable:$true] %s573
          %s575 = sshll.u32 [#allocation8], 4
          %s576 = int_to_ptr.vmem [resolvable:$true] %s575
          %578 = dma.hbm_to_vmem [thread:$0]  %s574, 16, %s576, [#allocation7]
        $region28: #{tpu_custom_call.1} parent=11 // pred_fallthru
          _
        // Predicated region
        $region29: #{tpu_custom_call.1} parent=11 // pred_check
          %p579 = pneg %p470
        $region30: #{tpu_custom_call.1} parent=11 // pred_check_branch
          %581 = sbr.rel (%p579) target = $region32
        $region31: #{tpu_custom_call.1} parent=11 // pred_region
          _
        $region32: #{tpu_custom_call.1} parent=11 // pred_fallthru
          _
        // Predicated region
        $region33: #{tpu_custom_call.1} parent=11 // pred_check
          %p582 = pneg %p491
        $region34: #{tpu_custom_call.1} parent=11 // pred_check_branch
          %584 = sbr.rel (%p582) target = $region36
        $region35: #{tpu_custom_call.1} parent=11 // pred_region
          _
        $region36: #{tpu_custom_call.1} parent=11 // pred_fallthru
          _
      $region12: #{tpu_custom_call.1} parent=5 // pred_fallthru
        _
      %p585 = scmp.lt.s32.totalorder %s36, 2
      // Predicated region
      $region37: #{tpu_custom_call.1} parent=5 // pred_check
        %p586 = pneg %p585
      $region38: #{tpu_custom_call.1} parent=5 // pred_check_branch
        %588 = sbr.rel (%p586) target = $region40
      $region39: #{tpu_custom_call.1} parent=5 // pred_region
        // Predicated region
        $region41: #{tpu_custom_call.1} parent=39 // pred_check
          %p589 = pneg %p157
        $region42: #{tpu_custom_call.1} parent=39 // pred_check_branch
          %591 = sbr.rel (%p589) target = $region44
        $region43: #{tpu_custom_call.1} parent=39 // pred_region
          %s592 = sand.u32 %s36, 1
          %s593 = scalar_lea.sflag [#allocation10], %s592
          %s594 = sand.u32 %s147, 1
          %s595 = smul.addr %s594, 16
          %s596 = scalar_lea.vmem [#allocation9], %s595
          %598 = vsyncadd %s593, 0
          %s599 = smul.addr %s44, 4
          %s600 = smul.addr %s599, 4
          %s601 = scalar_lea.hbm %s4, %s600
          %s602 = sshll.u32 %s601, 4
          %s603 = int_to_ptr.hbm [resolvable:$true] %s602
          %s604 = sshll.u32 %s596, 4
          %s605 = int_to_ptr.vmem [resolvable:$true] %s604
          %610 = dma.hbm_to_vmem [thread:$0]  %s603, 256, %s605, %s593, 64, 64, 4
        $region44: #{tpu_custom_call.1} parent=39 // pred_fallthru
          _
        // Predicated region
        $region45: #{tpu_custom_call.1} parent=39 // pred_check
          %p611 = pneg %p183
        $region46: #{tpu_custom_call.1} parent=39 // pred_check_branch
          %613 = sbr.rel (%p611) target = $region48
        $region47: #{tpu_custom_call.1} parent=39 // pred_region
          %p614 = scmp.lt.s32.totalorder %s44, 1
          %s615 = scalar_select %p614, %s44, 1
          %s616 = scalar_lea.vmem %s5, %s615
        $region48: #{tpu_custom_call.1} parent=39 // pred_fallthru
          _
        // Predicated region
        $region49: #{tpu_custom_call.1} parent=39 // pred_check
          %p617 = pneg %p209
        $region50: #{tpu_custom_call.1} parent=39 // pred_check_branch
          %619 = sbr.rel (%p617) target = $region52
        $region51: #{tpu_custom_call.1} parent=39 // pred_region
          %s620 = sand.u32 %s36, 1
          %s621 = scalar_lea.sflag [#allocation10], %s620
          %s622 = sand.u32 %s199, 1
          %s623 = smul.addr %s622, 16
          %s624 = scalar_lea.vmem [#allocation11], %s623
          %626 = vsyncadd %s621, 0
          %s627 = smul.addr %s44, 4
          %s628 = smul.addr %s627, 4
          %s629 = scalar_lea.hbm %s6, %s628
          %s630 = sshll.u32 %s629, 4
          %s631 = int_to_ptr.hbm [resolvable:$true] %s630
          %s632 = sshll.u32 %s624, 4
          %s633 = int_to_ptr.vmem [resolvable:$true] %s632
          %638 = dma.hbm_to_vmem [thread:$0]  %s631, 256, %s633, %s621, 64, 64, 4
        $region52: #{tpu_custom_call.1} parent=39 // pred_fallthru
          _
        // Predicated region
        $region53: #{tpu_custom_call.1} parent=39 // pred_check
          %p639 = pneg %p235
        $region54: #{tpu_custom_call.1} parent=39 // pred_check_branch
          %641 = sbr.rel (%p639) target = $region56
        $region55: #{tpu_custom_call.1} parent=39 // pred_region
          %p642 = scmp.lt.s32.totalorder %s44, 1
          %s643 = scalar_select %p642, %s44, 1
          %s644 = scalar_lea.vmem %s7, %s643
        $region56: #{tpu_custom_call.1} parent=39 // pred_fallthru
          _
        // Predicated region
        $region57: #{tpu_custom_call.1} parent=39 // pred_check
          %p645 = pneg %p261
        $region58: #{tpu_custom_call.1} parent=39 // pred_check_branch
          %647 = sbr.rel (%p645) target = $region60
        $region59: #{tpu_custom_call.1} parent=39 // pred_region
          %p648 = scmp.lt.s32.totalorder %s44, 1
          %s649 = scalar_select %p648, %s44, 1
          %s650 = scalar_lea.vmem %s8, %s649
        $region60: #{tpu_custom_call.1} parent=39 // pred_fallthru
          _
        // Predicated region
        $region61: #{tpu_custom_call.1} parent=39 // pred_check
          %p651 = pneg %p287
        $region62: #{tpu_custom_call.1} parent=39 // pred_check_branch
          %653 = sbr.rel (%p651) target = $region64
        $region63: #{tpu_custom_call.1} parent=39 // pred_region
          %p654 = scmp.lt.s32.totalorder %s44, 1
          %s655 = scalar_select %p654, %s44, 1
          %s656 = scalar_lea.vmem %s9, %s655
        $region64: #{tpu_custom_call.1} parent=39 // pred_fallthru
          _
        // Predicated region
        $region65: #{tpu_custom_call.1} parent=39 // pred_check
          %p657 = pneg %p313
        $region66: #{tpu_custom_call.1} parent=39 // pred_check_branch
          %659 = sbr.rel (%p657) target = $region68
        $region67: #{tpu_custom_call.1} parent=39 // pred_region
          %s660 = sand.u32 %s36, 1
          %s661 = scalar_lea.sflag [#allocation13], %s660
          %s662 = sand.u32 %s303, 1
          %s663 = smul.addr %s662, 16
          %s664 = scalar_lea.vmem [#allocation12], %s663
          %666 = vsyncadd %s661, 0
          %s667 = smul.addr %s44, 4
          %s668 = smul.addr %s667, 4
          %s669 = scalar_lea.hbm %s10, %s668
          %s670 = sshll.u32 %s669, 4
          %s671 = int_to_ptr.hbm [resolvable:$true] %s670
          %s672 = sshll.u32 %s664, 4
          %s673 = int_to_ptr.vmem [resolvable:$true] %s672
          %678 = dma.hbm_to_vmem [thread:$0]  %s671, 256, %s673, %s661, 64, 64, 4
        $region68: #{tpu_custom_call.1} parent=39 // pred_fallthru
          _
        // Predicated region
        $region69: #{tpu_custom_call.1} parent=39 // pred_check
          %p679 = pneg %p339
        $region70: #{tpu_custom_call.1} parent=39 // pred_check_branch
          %681 = sbr.rel (%p679) target = $region72
        $region71: #{tpu_custom_call.1} parent=39 // pred_region
          %p682 = scmp.lt.s32.totalorder %s44, 1
          %s683 = scalar_select %p682, %s44, 1
          %s684 = scalar_lea.vmem %s11, %s683
        $region72: #{tpu_custom_call.1} parent=39 // pred_fallthru
          _
        // Predicated region
        $region73: #{tpu_custom_call.1} parent=39 // pred_check
          %p685 = pneg %p365
        $region74: #{tpu_custom_call.1} parent=39 // pred_check_branch
          %687 = sbr.rel (%p685) target = $region76
        $region75: #{tpu_custom_call.1} parent=39 // pred_region
          %s688 = sand.u32 %s36, 1
          %s689 = scalar_lea.sflag [#allocation13], %s688
          %s690 = sand.u32 %s355, 1
          %s691 = smul.addr %s690, 16
          %s692 = scalar_lea.vmem [#allocation14], %s691
          %694 = vsyncadd %s689, 0
          %s695 = smul.addr %s44, 4
          %s696 = smul.addr %s695, 4
          %s697 = scalar_lea.hbm %s12, %s696
          %s698 = sshll.u32 %s697, 4
          %s699 = int_to_ptr.hbm [resolvable:$true] %s698
          %s700 = sshll.u32 %s692, 4
          %s701 = int_to_ptr.vmem [resolvable:$true] %s700
          %706 = dma.hbm_to_vmem [thread:$0]  %s699, 256, %s701, %s689, 64, 64, 4
        $region76: #{tpu_custom_call.1} parent=39 // pred_fallthru
          _
        // Predicated region
        $region77: #{tpu_custom_call.1} parent=39 // pred_check
          %p707 = pneg %p391
        $region78: #{tpu_custom_call.1} parent=39 // pred_check_branch
          %709 = sbr.rel (%p707) target = $region80
        $region79: #{tpu_custom_call.1} parent=39 // pred_region
          %p710 = scmp.lt.s32.totalorder %s44, 1
          %s711 = scalar_select %p710, %s44, 1
          %s712 = scalar_lea.vmem %s13, %s711
        $region80: #{tpu_custom_call.1} parent=39 // pred_fallthru
          _
        // Predicated region
        $region81: #{tpu_custom_call.1} parent=39 // pred_check
          %p713 = pneg %p417
        $region82: #{tpu_custom_call.1} parent=39 // pred_check_branch
          %715 = sbr.rel (%p713) target = $region84
        $region83: #{tpu_custom_call.1} parent=39 // pred_region
          %s716 = sand.u32 %s407, 1
          %s717 = scalar_lea.sflag [#allocation16], %s716
          %s718 = sand.u32 %s407, 1
          %s719 = scalar_lea.vmem [#allocation15], %s718
          %721 = vsyncadd %s717, 0
          %s722 = scalar_lea.hbm %s14, %s44
          %s724 = sshll.u32 %s722, 4
          %s725 = int_to_ptr.hbm [resolvable:$true] %s724
          %s726 = sshll.u32 %s719, 4
          %s727 = int_to_ptr.vmem [resolvable:$true] %s726
          %729 = dma.hbm_to_vmem [thread:$0]  %s725, 16, %s727, %s717
        $region84: #{tpu_custom_call.1} parent=39 // pred_fallthru
          _
        // Predicated region
        $region85: #{tpu_custom_call.1} parent=39 // pred_check
          %p730 = pneg %p443
        $region86: #{tpu_custom_call.1} parent=39 // pred_check_branch
          %732 = sbr.rel (%p730) target = $region88
        $region87: #{tpu_custom_call.1} parent=39 // pred_region
          %p733 = scmp.lt.s32.totalorder %s44, 1
          %s734 = scalar_select %p733, %s44, 1
          %s735 = scalar_lea.vmem %s15, %s734
        $region88: #{tpu_custom_call.1} parent=39 // pred_fallthru
          _
      $region40: #{tpu_custom_call.1} parent=5 // pred_fallthru
        _
      %p736 = scmp.le.s32.totalorder 1, %s36
      %p737 = scmp.lt.s32.totalorder %s36, 3
      %p738 = pnand %p736, %p737
      %p739 = pneg %p738
      // Predicated region
      $region89: #{tpu_custom_call.1} parent=5 // pred_check
        _
      $region90: #{tpu_custom_call.1} parent=5 // pred_check_branch
        %741 = sbr.rel (%p738) target = $region92
      $region91: #{tpu_custom_call.1} parent=5 // pred_region
        %s742 = ssub.s32 %s36, 1
        // Predicated region
        $region93: #{tpu_custom_call.1} parent=91 // pred_check
          %p743 = pneg %p95
        $region94: #{tpu_custom_call.1} parent=91 // pred_check_branch
          %745 = sbr.rel (%p743) target = $region96
        $region95: #{tpu_custom_call.1} parent=91 // pred_region
          %747 = dma.done [#allocation4], 128
        $region96: #{tpu_custom_call.1} parent=91 // pred_fallthru
          _
        // Predicated region
        $region97: #{tpu_custom_call.1} parent=91 // pred_check
          %p748 = pneg %p116
        $region98: #{tpu_custom_call.1} parent=91 // pred_check_branch
          %750 = sbr.rel (%p748) target = $region100
        $region99: #{tpu_custom_call.1} parent=91 // pred_region
          %752 = dma.done [#allocation7], 128
        $region100: #{tpu_custom_call.1} parent=91 // pred_fallthru
          _
        // Predicated region
        $region101: #{tpu_custom_call.1} parent=91 // pred_check
          %p753 = pneg %p137
        $region102: #{tpu_custom_call.1} parent=91 // pred_check_branch
          %755 = sbr.rel (%p753) target = $region104
        $region103: #{tpu_custom_call.1} parent=91 // pred_region
          %757 = dma.done [#allocation7], 16
        $region104: #{tpu_custom_call.1} parent=91 // pred_fallthru
          _
        %s758 = sand.u32 %s41, 1
        %s759 = scalar_lea.sflag [#allocation10], %s758
        %s760 = sand.u32 %s150, 1
        %s761 = smul.addr %s760, 16
        %s762 = scalar_lea.vmem [#allocation9], %s761
        // Predicated region
        $region105: #{tpu_custom_call.1} parent=91 // pred_check
          %p763 = pneg %p163
        $region106: #{tpu_custom_call.1} parent=91 // pred_check_branch
          %765 = sbr.rel (%p763) target = $region108
        $region107: #{tpu_custom_call.1} parent=91 // pred_region
          %767 = dma.done %s759, 256
        $region108: #{tpu_custom_call.1} parent=91 // pred_fallthru
          _
        %s768 = sand.u32 %s41, 1
        %s769 = scalar_lea.sflag [#allocation10], %s768
        %s770 = sand.u32 %s202, 1
        %s771 = smul.addr %s770, 16
        %s772 = scalar_lea.vmem [#allocation11], %s771
        // Predicated region
        $region109: #{tpu_custom_call.1} parent=91 // pred_check
          %p773 = pneg %p215
        $region110: #{tpu_custom_call.1} parent=91 // pred_check_branch
          %775 = sbr.rel (%p773) target = $region112
        $region111: #{tpu_custom_call.1} parent=91 // pred_region
          %777 = dma.done %s769, 256
        $region112: #{tpu_custom_call.1} parent=91 // pred_fallthru
          _
        %s778 = sand.u32 %s41, 1
        %s779 = scalar_lea.sflag [#allocation13], %s778
        %s780 = sand.u32 %s306, 1
        %s781 = smul.addr %s780, 16
        %s782 = scalar_lea.vmem [#allocation12], %s781
        // Predicated region
        $region113: #{tpu_custom_call.1} parent=91 // pred_check
          %p783 = pneg %p319
        $region114: #{tpu_custom_call.1} parent=91 // pred_check_branch
          %785 = sbr.rel (%p783) target = $region116
        $region115: #{tpu_custom_call.1} parent=91 // pred_region
          %787 = dma.done %s779, 256
        $region116: #{tpu_custom_call.1} parent=91 // pred_fallthru
          _
        %s788 = sand.u32 %s41, 1
        %s789 = scalar_lea.sflag [#allocation13], %s788
        %s790 = sand.u32 %s358, 1
        %s791 = smul.addr %s790, 16
        %s792 = scalar_lea.vmem [#allocation14], %s791
        // Predicated region
        $region117: #{tpu_custom_call.1} parent=91 // pred_check
          %p793 = pneg %p371
        $region118: #{tpu_custom_call.1} parent=91 // pred_check_branch
          %795 = sbr.rel (%p793) target = $region120
        $region119: #{tpu_custom_call.1} parent=91 // pred_region
          %797 = dma.done %s789, 256
        $region120: #{tpu_custom_call.1} parent=91 // pred_fallthru
          _
        %s798 = sand.u32 %s410, 1
        %s799 = scalar_lea.sflag [#allocation16], %s798
        %s800 = sand.u32 %s410, 1
        %s801 = scalar_lea.vmem [#allocation15], %s800
        // Predicated region
        $region121: #{tpu_custom_call.1} parent=91 // pred_check
          %p802 = pneg %p423
        $region122: #{tpu_custom_call.1} parent=91 // pred_check_branch
          %804 = sbr.rel (%p802) target = $region124
        $region123: #{tpu_custom_call.1} parent=91 // pred_region
          %806 = dma.done %s799, 16
        $region124: #{tpu_custom_call.1} parent=91 // pred_fallthru
          _
        %s807 = smul.u32 2, %s45
        %p808 = scmp.lt.s32.totalorder %s807, 1
        %s809 = scalar_select %p808, %s807, 1
        %s810 = smul.addr %s809, 8
        %s811 = scalar_lea.vmem %s0, %s810
        %p812 = pneg %p74
        %p813 = pneg %p71
        %p814 = pneg %p95
        %p815 = pneg %p92
        %p816 = pneg %p116
        %p817 = pneg %p113
        %p818 = pneg %p137
        %p819 = pneg %p134
        %s820 = sand.u32 %s41, 1
        %s821 = scalar_lea.sflag [#allocation10], %s820
        %s822 = sand.u32 %s150, 1
        %s823 = smul.addr %s822, 16
        %s824 = scalar_lea.vmem [#allocation9], %s823
        %p825 = pneg %p163
        %p826 = pneg %p160
        %p827 = scmp.lt.s32.totalorder %s46, 1
        %s828 = scalar_select %p827, %s46, 1
        %s829 = scalar_lea.vmem %s5, %s828
        %p830 = pneg %p189
        %p831 = pneg %p186
        %s832 = sand.u32 %s41, 1
        %s833 = scalar_lea.sflag [#allocation10], %s832
        %s834 = sand.u32 %s202, 1
        %s835 = smul.addr %s834, 16
        %s836 = scalar_lea.vmem [#allocation11], %s835
        %p837 = pneg %p215
        %p838 = pneg %p212
        %p839 = scmp.lt.s32.totalorder %s46, 1
        %s840 = scalar_select %p839, %s46, 1
        %s841 = scalar_lea.vmem %s7, %s840
        %p842 = pneg %p241
        %p843 = pneg %p238
        %p844 = scmp.lt.s32.totalorder %s46, 1
        %s845 = scalar_select %p844, %s46, 1
        %s846 = scalar_lea.vmem %s8, %s845
        %p847 = pneg %p267
        %p848 = pneg %p264
        %p849 = scmp.lt.s32.totalorder %s46, 1
        %s850 = scalar_select %p849, %s46, 1
        %s851 = scalar_lea.vmem %s9, %s850
        %p852 = pneg %p293
        %p853 = pneg %p290
        %s854 = sand.u32 %s41, 1
        %s855 = scalar_lea.sflag [#allocation13], %s854
        %s856 = sand.u32 %s306, 1
        %s857 = smul.addr %s856, 16
        %s858 = scalar_lea.vmem [#allocation12], %s857
        %p859 = pneg %p319
        %p860 = pneg %p316
        %p861 = scmp.lt.s32.totalorder %s46, 1
        %s862 = scalar_select %p861, %s46, 1
        %s863 = scalar_lea.vmem %s11, %s862
        %p864 = pneg %p345
        %p865 = pneg %p342
        %s866 = sand.u32 %s41, 1
        %s867 = scalar_lea.sflag [#allocation13], %s866
        %s868 = sand.u32 %s358, 1
        %s869 = smul.addr %s868, 16
        %s870 = scalar_lea.vmem [#allocation14], %s869
        %p871 = pneg %p371
        %p872 = pneg %p368
        %p873 = scmp.lt.s32.totalorder %s46, 1
        %s874 = scalar_select %p873, %s46, 1
        %s875 = scalar_lea.vmem %s13, %s874
        %p876 = pneg %p397
        %p877 = pneg %p394
        %s878 = sand.u32 %s410, 1
        %s879 = scalar_lea.sflag [#allocation16], %s878
        %s880 = sand.u32 %s410, 1
        %s881 = scalar_lea.vmem [#allocation15], %s880
        %p882 = pneg %p423
        %p883 = pneg %p420
        %p884 = scmp.lt.s32.totalorder %s46, 1
        %s885 = scalar_select %p884, %s46, 1
        %s886 = scalar_lea.vmem %s15, %s885
        %p887 = pneg %p449
        %p888 = pneg %p446
        %p889 = pneg %p470
        %p890 = pneg %p467
        %p891 = pneg %p491
        %p892 = pneg %p488
        %p893 = pneg %p517
        %p894 = pneg %p514
        %s895 = smul.u32 2, %s45
        %p896 = scmp.lt.s32.totalorder %s895, 1
        %s897 = scalar_select %p896, %s895, 1
        %s898 = smul.addr %s897, 8
        %s899 = scalar_lea.vmem %s0, %s898
        %s900 = smul.u32 2, %s45
        %p901 = scmp.lt.s32.totalorder %s46, 1
        %s902 = scalar_select %p901, %s46, 1
        %s903 = scalar_lea.vmem %s5, %s902
        %p904 = scmp.lt.s32.totalorder %s46, 1
        %s905 = scalar_select %p904, %s46, 1
        %s906 = scalar_lea.vmem %s7, %s905
        %p907 = scmp.lt.s32.totalorder %s46, 1
        %s908 = scalar_select %p907, %s46, 1
        %s909 = scalar_lea.vmem %s8, %s908
        %p910 = scmp.lt.s32.totalorder %s46, 1
        %s911 = scalar_select %p910, %s46, 1
        %s912 = scalar_lea.vmem %s9, %s911
        %p913 = scmp.lt.s32.totalorder %s46, 1
        %s914 = scalar_select %p913, %s46, 1
        %s915 = scalar_lea.vmem %s11, %s914
        %p916 = scmp.lt.s32.totalorder %s46, 1
        %s917 = scalar_select %p916, %s46, 1
        %s918 = scalar_lea.vmem %s13, %s917
        %p919 = scmp.lt.s32.totalorder %s46, 1
        %s920 = scalar_select %p919, %s46, 1
        %s921 = scalar_lea.vmem %s15, %s920
        %s922 = smul.u32 2, %s45
        %p924 = scmp.eq.s32.totalorder %s46, 0
        // Predicated region
        $region125: #{tpu_custom_call.1} parent=91 // pred_check
          %p925 = pneg %p924
        $region126: #{tpu_custom_call.1} parent=91 // pred_check_branch
          %927 = sbr.rel (%p925) target = $region128
        $region127: #{tpu_custom_call.1} parent=91 // pred_region
          %v928 = vld [vmem:[%s899] sm:$0xff]
          %v929 = vld [vmem:[%s899 + $0x8] sm:$0xff]
          %v930 = vpack.c.bf16 %v929, %v928
          %v931 = vld [vmem:[#allocation6] sm:$0xf]
          %v932 = vld [vmem:[#allocation6 + $0x4] sm:$0xf]
          %v933 = vld [vmem:[#allocation8] sm:$0x1]
          %v935 = vperm.slane %v933, 0
          %v939 = vunpack.c.l.b16 %v931
          %v940 = vunpack.c.l.b16 %v932
          %v941 = vpack.c.b16 %v940, %v939
          %vm943 = vcmask 130048
          %v945 = vsel %vm943, %v930, 0
          %947 = vmatpush.bf16.msra.mxu0 0
          %948 = vmatpush.bf16.msra.mxu0 0
          %949 = vmatpush.bf16.msra.mxu0 0
          %950 = vmatpush.bf16.msra.mxu0 0
          %951 = vmatpush.bf16.msra.mxu0 0
          %952 = vmatpush.bf16.msra.mxu0 0
          %953 = vmatpush.bf16.msra.mxu0 0
          %954 = vmatpush.bf16.msra.mxu0 %v941
          %955 = vmatmul.bf16.gmra.mxu0 %v945
          %v956 = vpop.f32.mrf.mxu0
          %v957 = vadd.f32 %v935, %v956
          %v958 = vpop.f32.mrf.mxu0
          %v959 = vadd.f32 %v935, %v958
          %960 = vdwg.mxu0
          %v961 = vmax.f32 %v957, 0.0
          %v962 = vmax.f32 %v959, 0.0
          %v963 = vmul.f32 %v961, 5.656854
          %v964 = vmul.f32 %v962, 5.656854
          %v965 = vld [vmem:[#allocation3] sm:$0xff]
          %v966 = vadd.f32 %v963, %v965
          %v967 = vadd.f32 %v964, %v965
          %vm968 = vcmask 261120
          %969 = vst.msk [vmem:[#allocation2] sm:$0xff] %vm968, %v966
          %970 = vst.msk [vmem:[#allocation2 + $0x8] sm:$0xff] %vm968, %v967
        $region128: #{tpu_custom_call.1} parent=91 // pred_fallthru
          _
        %v971 = vld [vmem:[#allocation2] sm:$0xff]
        %v972 = vld [vmem:[#allocation2 + $0x8] sm:$0xff]
        %v973 = vpack.c.bf16 %v972, %v971
        %v974 = vld [vmem:[%s762] sm:$0xf]
        %v975 = vld [vmem:[%s762 + $0x4] sm:$0xf]
        %v976 = vld [vmem:[%s762 + $0x8] sm:$0xf]
        %v977 = vld [vmem:[%s762 + $0xc] sm:$0xf]
        %v978 = vld [vmem:[%s903] sm:$0x1]
        %v980 = vperm.slane %v978, 0
        %v986 = vunpack.c.l.b16 %v974
        %v987 = vunpack.c.l.b16 %v975
        %v988 = vunpack.c.l.b16 %v976
        %v989 = vunpack.c.l.b16 %v977
        %v990 = vpack.c.b16 %v987, %v986
        %v991 = vpack.c.b16 %v989, %v988
        %vm994 = vcmask 261120
        %v996 = vsel %vm994, %v973, 0
        %998 = vmatpush.bf16.msra.mxu0 0
        %999 = vmatpush.bf16.msra.mxu0 0
        %1000 = vmatpush.bf16.msra.mxu0 0
        %1001 = vmatpush.bf16.msra.mxu0 0
        %1002 = vmatpush.bf16.msra.mxu0 0
        %1003 = vmatpush.bf16.msra.mxu0 0
        %1004 = vmatpush.bf16.msra.mxu0 %v991
        %1005 = vmatpush.bf16.msra.mxu0 %v990
        %1006 = vmatmul.bf16.gmra.mxu0 %v996
        %v1007 = vpop.f32.mrf.mxu0
        %v1008 = vadd.f32 %v980, %v1007
        %v1009 = vpop.f32.mrf.mxu0
        %v1010 = vadd.f32 %v980, %v1009
        %1011 = vdwg.mxu0
        %v1012 = vmul.f32 %v1008, 0.35355338
        %v1013 = vmul.f32 %v1010, 0.35355338
        %v1014 = vpack.c.bf16 %v1012, %v1012
        %v1015 = vpack.c.bf16 %v1013, %v1013
        %1018 = vrot.lane.b32.xlu0 %v1014, 120
        %v1019 = vpop.permute.xlu0 %1018
        %1020 = vrot.lane.b32.xlu0 %v1015, 120
        %v1021 = vpop.permute.xlu0 %1020
        %1022 = vrot.lane.b32.xlu0 %v1014, 112
        %v1023 = vpop.permute.xlu0 %1022
        %1024 = vrot.lane.b32.xlu0 %v1015, 112
        %v1025 = vpop.permute.xlu0 %1024
        %1026 = vrot.lane.b32.xlu0 %v1014, 104
        %v1027 = vpop.permute.xlu0 %1026
        %1028 = vrot.lane.b32.xlu0 %v1015, 104
        %v1029 = vpop.permute.xlu0 %1028
        %v1030 = vpack.c.bf16 %v1008, %v1008
        %v1031 = vpack.c.bf16 %v1010, %v1010
        %1034 = vrot.lane.b32.xlu0 %v1030, 120
        %v1035 = vpop.permute.xlu0 %1034
        %1036 = vrot.lane.b32.xlu0 %v1031, 120
        %v1037 = vpop.permute.xlu0 %1036
        %1038 = vrot.lane.b32.xlu0 %v1030, 112
        %v1039 = vpop.permute.xlu0 %1038
        %1040 = vrot.lane.b32.xlu0 %v1031, 112
        %v1041 = vpop.permute.xlu0 %1040
        %1042 = vrot.lane.b32.xlu0 %v1030, 104
        %v1043 = vpop.permute.xlu0 %1042
        %1044 = vrot.lane.b32.xlu0 %v1031, 104
        %v1045 = vpop.permute.xlu0 %1044
        %v1046 = vlaneseq
        %v1047 = vshrl.u32 %v1046, 7
        %v1048 = vlaneseq
        %v1049 = vand.u32 %v1048, 127
        %vm1050 = vcmp.le.s32.totalorder %v1049, %v1047
        %v1051 = vsel %vm1050, 0.0, -1e+30
        %v1052 = vunpack.c.l.b16 %v1030
        %v1053 = vpack.c.b16 %v1052, %v1052
        %1054 = vrot.lane.b32.xlu0 %v1053, 96
        %v1055 = vpop.permute.xlu0 %1054
        %vm1056 = vcmask 64512
        %v1058 = vsel %vm1056, %v1014, 0
        %v1061 = vsel %vm1056, %v1055, 0
        %1063 = vmatpush.bf16.xpose.msra.mxu0 0
        %1064 = vmatpush.bf16.xpose.msra.mxu0 0
        %1065 = vmatpush.bf16.xpose.msra.mxu0 0
        %1066 = vmatpush.bf16.xpose.msra.mxu0 0
        %1067 = vmatpush.bf16.xpose.msra.mxu0 0
        %1068 = vmatpush.bf16.xpose.msra.mxu0 0
        %1069 = vmatpush.bf16.xpose.msra.mxu0 0
        %1070 = vmatpush.bf16.xpose.msra.mxu0 %v1061
        %1071 = vmatmul.bf16.gmra.mxu0 %v1058
        %v1072 = vpop.f32.mrf.mxu0
        %v1073 = vadd.f32 %v1051, %v1072
        %v1074 = vpop.f32.mrf.mxu0
        %1075 = vdwg.mxu0
        %v1076 = vunpack.c.l.b16 %v1031
        %v1077 = vpack.c.b16 %v1076, %v1076
        %1078 = vrot.lane.b32.xlu0 %v1077, 96
        %v1079 = vpop.permute.xlu0 %1078
        %v1081 = vsel %vm1056, %v1015, 0
        %v1084 = vsel %vm1056, %v1079, 0
        %1086 = vmatpush.bf16.xpose.msra.mxu0 0
        %1087 = vmatpush.bf16.xpose.msra.mxu0 0
        %1088 = vmatpush.bf16.xpose.msra.mxu0 0
        %1089 = vmatpush.bf16.xpose.msra.mxu0 0
        %1090 = vmatpush.bf16.xpose.msra.mxu0 0
        %1091 = vmatpush.bf16.xpose.msra.mxu0 0
        %1092 = vmatpush.bf16.xpose.msra.mxu0 0
        %1093 = vmatpush.bf16.xpose.msra.mxu0 %v1084
        %1094 = vmatmul.bf16.gmra.mxu0 %v1081
        %v1095 = vpop.f32.mrf.mxu0
        %v1096 = vadd.f32 %v1051, %v1095
        %v1097 = vpop.f32.mrf.mxu0
        %1098 = vdwg.mxu0
        %v1099 = vunpack.c.l.b16 %v1035
        %v1100 = vpack.c.b16 %v1099, %v1099
        %1101 = vrot.lane.b32.xlu0 %v1100, 96
        %v1102 = vpop.permute.xlu0 %1101
        %v1104 = vsel %vm1056, %v1019, 0
        %v1107 = vsel %vm1056, %v1102, 0
        %1109 = vmatpush.bf16.xpose.msra.mxu0 0
        %1110 = vmatpush.bf16.xpose.msra.mxu0 0
        %1111 = vmatpush.bf16.xpose.msra.mxu0 0
        %1112 = vmatpush.bf16.xpose.msra.mxu0 0
        %1113 = vmatpush.bf16.xpose.msra.mxu0 0
        %1114 = vmatpush.bf16.xpose.msra.mxu0 0
        %1115 = vmatpush.bf16.xpose.msra.mxu0 0
        %1116 = vmatpush.bf16.xpose.msra.mxu0 %v1107
        %1117 = vmatmul.bf16.gmra.mxu0 %v1104
        %v1118 = vpop.f32.mrf.mxu0
        %v1119 = vadd.f32 %v1051, %v1118
        %v1120 = vpop.f32.mrf.mxu0
        %1121 = vdwg.mxu0
        %v1122 = vunpack.c.l.b16 %v1037
        %v1123 = vpack.c.b16 %v1122, %v1122
        %1124 = vrot.lane.b32.xlu0 %v1123, 96
        %v1125 = vpop.permute.xlu0 %1124
        %v1127 = vsel %vm1056, %v1021, 0
        %v1130 = vsel %vm1056, %v1125, 0
        %1132 = vmatpush.bf16.xpose.msra.mxu0 0
        %1133 = vmatpush.bf16.xpose.msra.mxu0 0
        %1134 = vmatpush.bf16.xpose.msra.mxu0 0
        %1135 = vmatpush.bf16.xpose.msra.mxu0 0
        %1136 = vmatpush.bf16.xpose.msra.mxu0 0
        %1137 = vmatpush.bf16.xpose.msra.mxu0 0
        %1138 = vmatpush.bf16.xpose.msra.mxu0 0
        %1139 = vmatpush.bf16.xpose.msra.mxu0 %v1130
        %1140 = vmatmul.bf16.gmra.mxu0 %v1127
        %v1141 = vpop.f32.mrf.mxu0
        %v1142 = vadd.f32 %v1051, %v1141
        %v1143 = vpop.f32.mrf.mxu0
        %1144 = vdwg.mxu0
        %v1145 = vunpack.c.l.b16 %v1039
        %v1146 = vpack.c.b16 %v1145, %v1145
        %1147 = vrot.lane.b32.xlu0 %v1146, 96
        %v1148 = vpop.permute.xlu0 %1147
        %v1150 = vsel %vm1056, %v1023, 0
        %v1153 = vsel %vm1056, %v1148, 0
        %1155 = vmatpush.bf16.xpose.msra.mxu0 0
        %1156 = vmatpush.bf16.xpose.msra.mxu0 0
        %1157 = vmatpush.bf16.xpose.msra.mxu0 0
        %1158 = vmatpush.bf16.xpose.msra.mxu0 0
        %1159 = vmatpush.bf16.xpose.msra.mxu0 0
        %1160 = vmatpush.bf16.xpose.msra.mxu0 0
        %1161 = vmatpush.bf16.xpose.msra.mxu0 0
        %1162 = vmatpush.bf16.xpose.msra.mxu0 %v1153
        %1163 = vmatmul.bf16.gmra.mxu0 %v1150
        %v1164 = vpop.f32.mrf.mxu0
        %v1165 = vadd.f32 %v1051, %v1164
        %v1166 = vpop.f32.mrf.mxu0
        %1167 = vdwg.mxu0
        %v1168 = vunpack.c.l.b16 %v1041
        %v1169 = vpack.c.b16 %v1168, %v1168
        %1170 = vrot.lane.b32.xlu0 %v1169, 96
        %v1171 = vpop.permute.xlu0 %1170
        %v1173 = vsel %vm1056, %v1025, 0
        %v1176 = vsel %vm1056, %v1171, 0
        %1178 = vmatpush.bf16.xpose.msra.mxu0 0
        %1179 = vmatpush.bf16.xpose.msra.mxu0 0
        %1180 = vmatpush.bf16.xpose.msra.mxu0 0
        %1181 = vmatpush.bf16.xpose.msra.mxu0 0
        %1182 = vmatpush.bf16.xpose.msra.mxu0 0
        %1183 = vmatpush.bf16.xpose.msra.mxu0 0
        %1184 = vmatpush.bf16.xpose.msra.mxu0 0
        %1185 = vmatpush.bf16.xpose.msra.mxu0 %v1176
        %1186 = vmatmul.bf16.gmra.mxu0 %v1173
        %v1187 = vpop.f32.mrf.mxu0
        %v1188 = vadd.f32 %v1051, %v1187
        %v1189 = vpop.f32.mrf.mxu0
        %1190 = vdwg.mxu0
        %v1191 = vunpack.c.l.b16 %v1043
        %v1192 = vpack.c.b16 %v1191, %v1191
        %1193 = vrot.lane.b32.xlu0 %v1192, 96
        %v1194 = vpop.permute.xlu0 %1193
        %v1196 = vsel %vm1056, %v1027, 0
        %v1199 = vsel %vm1056, %v1194, 0
        %1201 = vmatpush.bf16.xpose.msra.mxu0 0
        %1202 = vmatpush.bf16.xpose.msra.mxu0 0
        %1203 = vmatpush.bf16.xpose.msra.mxu0 0
        %1204 = vmatpush.bf16.xpose.msra.mxu0 0
        %1205 = vmatpush.bf16.xpose.msra.mxu0 0
        %1206 = vmatpush.bf16.xpose.msra.mxu0 0
        %1207 = vmatpush.bf16.xpose.msra.mxu0 0
        %1208 = vmatpush.bf16.xpose.msra.mxu0 %v1199
        %1209 = vmatmul.bf16.gmra.mxu0 %v1196
        %v1210 = vpop.f32.mrf.mxu0
        %v1211 = vadd.f32 %v1051, %v1210
        %v1212 = vpop.f32.mrf.mxu0
        %1213 = vdwg.mxu0
        %v1214 = vunpack.c.l.b16 %v1045
        %v1215 = vpack.c.b16 %v1214, %v1214
        %1216 = vrot.lane.b32.xlu0 %v1215, 96
        %v1217 = vpop.permute.xlu0 %1216
        %v1219 = vsel %vm1056, %v1029, 0
        %v1222 = vsel %vm1056, %v1217, 0
        %1224 = vmatpush.bf16.xpose.msra.mxu0 0
        %1225 = vmatpush.bf16.xpose.msra.mxu0 0
        %1226 = vmatpush.bf16.xpose.msra.mxu0 0
        %1227 = vmatpush.bf16.xpose.msra.mxu0 0
        %1228 = vmatpush.bf16.xpose.msra.mxu0 0
        %1229 = vmatpush.bf16.xpose.msra.mxu0 0
        %1230 = vmatpush.bf16.xpose.msra.mxu0 0
        %1231 = vmatpush.bf16.xpose.msra.mxu0 %v1222
        %1232 = vmatmul.bf16.gmra.mxu0 %v1219
        %v1233 = vpop.f32.mrf.mxu0
        %v1234 = vadd.f32 %v1051, %v1233
        %v1235 = vpop.f32.mrf.mxu0
        %1236 = vdwg.mxu0
        %v1237 = vsel %vm1056, %v1073, -inf
        %1238 = vmax.xlane.f32.xlu0 %v1237
        %v1239 = vpop.xlane.xlu0 %1238
        %v1240 = vsel %vm1056, %v1096, -inf
        %1241 = vmax.xlane.f32.xlu0 %v1240
        %v1242 = vpop.xlane.xlu0 %1241
        %v1243 = vsel %vm1056, %v1119, -inf
        %1244 = vmax.xlane.f32.xlu0 %v1243
        %v1245 = vpop.xlane.xlu0 %1244
        %v1246 = vsel %vm1056, %v1142, -inf
        %1247 = vmax.xlane.f32.xlu0 %v1246
        %v1248 = vpop.xlane.xlu0 %1247
        %v1249 = vsel %vm1056, %v1165, -inf
        %1250 = vmax.xlane.f32.xlu0 %v1249
        %v1251 = vpop.xlane.xlu0 %1250
        %v1252 = vsel %vm1056, %v1188, -inf
        %1253 = vmax.xlane.f32.xlu0 %v1252
        %v1254 = vpop.xlane.xlu0 %1253
        %v1255 = vsel %vm1056, %v1211, -inf
        %1256 = vmax.xlane.f32.xlu0 %v1255
        %v1257 = vpop.xlane.xlu0 %1256
        %v1258 = vsel %vm1056, %v1234, -inf
        %1259 = vmax.xlane.f32.xlu0 %v1258
        %v1260 = vpop.xlane.xlu0 %1259
        %v1261 = vsub.f32 %v1073, %v1239
        %v1262 = vsub.f32 %v1096, %v1242
        %v1263 = vsub.f32 %v1119, %v1245
        %v1264 = vsub.f32 %v1142, %v1248
        %v1265 = vsub.f32 %v1165, %v1251
        %v1266 = vsub.f32 %v1188, %v1254
        %v1267 = vsub.f32 %v1211, %v1257
        %v1268 = vsub.f32 %v1234, %v1260
        %v1269 = vmul.f32 %v1261, 1.442695
        %v1270 = vpow.pop %v1269
        %v1271 = vmul.f32 %v1262, 1.442695
        %v1272 = vpow.pop %v1271
        %v1273 = vmul.f32 %v1263, 1.442695
        %v1274 = vpow.pop %v1273
        %v1275 = vmul.f32 %v1264, 1.442695
        %v1276 = vpow.pop %v1275
        %v1277 = vmul.f32 %v1265, 1.442695
        %v1278 = vpow.pop %v1277
        %v1279 = vmul.f32 %v1266, 1.442695
        %v1280 = vpow.pop %v1279
        %v1281 = vmul.f32 %v1267, 1.442695
        %v1282 = vpow.pop %v1281
        %v1283 = vmul.f32 %v1268, 1.442695
        %v1284 = vpow.pop %v1283
        %v1285 = vsel %vm1056, %v1270, 0.0
        %1286 = vadd.xlane.f32.xlu0 %v1285
        %v1287 = vpop.xlane.xlu0 %1286
        %v1288 = vsel %vm1056, %v1272, 0.0
        %1289 = vadd.xlane.f32.xlu0 %v1288
        %v1290 = vpop.xlane.xlu0 %1289
        %v1291 = vsel %vm1056, %v1274, 0.0
        %1292 = vadd.xlane.f32.xlu0 %v1291
        %v1293 = vpop.xlane.xlu0 %1292
        %v1294 = vsel %vm1056, %v1276, 0.0
        %1295 = vadd.xlane.f32.xlu0 %v1294
        %v1296 = vpop.xlane.xlu0 %1295
        %v1297 = vsel %vm1056, %v1278, 0.0
        %1298 = vadd.xlane.f32.xlu0 %v1297
        %v1299 = vpop.xlane.xlu0 %1298
        %v1300 = vsel %vm1056, %v1280, 0.0
        %1301 = vadd.xlane.f32.xlu0 %v1300
        %v1302 = vpop.xlane.xlu0 %1301
        %v1303 = vsel %vm1056, %v1282, 0.0
        %1304 = vadd.xlane.f32.xlu0 %v1303
        %v1305 = vpop.xlane.xlu0 %1304
        %v1306 = vsel %vm1056, %v1284, 0.0
        %1307 = vadd.xlane.f32.xlu0 %v1306
        %v1308 = vpop.xlane.xlu0 %1307
        %v1309 = vrcp.pop %v1287
        %v1310 = vrcp.pop %v1290
        %v1311 = vrcp.pop %v1293
        %v1312 = vrcp.pop %v1296
        %v1313 = vrcp.pop %v1299
        %v1314 = vrcp.pop %v1302
        %v1315 = vrcp.pop %v1305
        %v1316 = vrcp.pop %v1308
        %v1317 = vmul.f32 %v1270, %v1309
        %v1318 = vmul.f32 %v1272, %v1310
        %v1319 = vmul.f32 %v1274, %v1311
        %v1320 = vmul.f32 %v1276, %v1312
        %v1321 = vmul.f32 %v1278, %v1313
        %v1322 = vmul.f32 %v1280, %v1314
        %v1323 = vmul.f32 %v1282, %v1315
        %v1324 = vmul.f32 %v1284, %v1316
        %v1325 = vpack.c.bf16 %v1317, %v1317
        %v1326 = vpack.c.bf16 %v1318, %v1318
        %v1327 = vpack.c.bf16 %v1319, %v1319
        %v1328 = vpack.c.bf16 %v1320, %v1320
        %v1329 = vpack.c.bf16 %v1321, %v1321
        %v1330 = vpack.c.bf16 %v1322, %v1322
        %v1331 = vpack.c.bf16 %v1323, %v1323
        %v1332 = vpack.c.bf16 %v1324, %v1324
        %1333 = vrot.lane.b32.xlu0 %v1053, 64
        %v1334 = vpop.permute.xlu0 %1333
        %v1336 = vsel %vm1056, %v1325, 0
        %vm1338 = vcmask 1043456
        %v1340 = vsel %vm1338, %v1334, 0
        %1342 = vmatpush.bf16.msra.mxu0 0
        %1343 = vmatpush.bf16.msra.mxu0 0
        %1344 = vmatpush.bf16.msra.mxu0 0
        %1345 = vmatpush.bf16.msra.mxu0 0
        %1346 = vmatpush.bf16.msra.mxu0 0
        %1347 = vmatpush.bf16.msra.mxu0 0
        %1348 = vmatpush.bf16.msra.mxu0 0
        %1349 = vmatpush.bf16.msra.mxu0 %v1340
        %1350 = vmatmul.bf16.gmra.mxu0 %v1336
        %v1351 = vpop.f32.mrf.mxu0
        %v1352 = vadd.f32 0.0, %v1351
        %v1353 = vpop.f32.mrf.mxu0
        %1354 = vdwg.mxu0
        %1355 = vrot.lane.b32.xlu0 %v1077, 64
        %v1356 = vpop.permute.xlu0 %1355
        %v1358 = vsel %vm1056, %v1326, 0
        %v1361 = vsel %vm1338, %v1356, 0
        %1363 = vmatpush.bf16.msra.mxu0 0
        %1364 = vmatpush.bf16.msra.mxu0 0
        %1365 = vmatpush.bf16.msra.mxu0 0
        %1366 = vmatpush.bf16.msra.mxu0 0
        %1367 = vmatpush.bf16.msra.mxu0 0
        %1368 = vmatpush.bf16.msra.mxu0 0
        %1369 = vmatpush.bf16.msra.mxu0 0
        %1370 = vmatpush.bf16.msra.mxu0 %v1361
        %1371 = vmatmul.bf16.gmra.mxu0 %v1358
        %v1372 = vpop.f32.mrf.mxu0
        %v1373 = vadd.f32 0.0, %v1372
        %v1374 = vpop.f32.mrf.mxu0
        %1375 = vdwg.mxu0
        %1376 = vrot.lane.b32.xlu0 %v1100, 64
        %v1377 = vpop.permute.xlu0 %1376
        %v1379 = vsel %vm1056, %v1327, 0
        %v1382 = vsel %vm1338, %v1377, 0
        %1384 = vmatpush.bf16.msra.mxu0 0
        %1385 = vmatpush.bf16.msra.mxu0 0
        %1386 = vmatpush.bf16.msra.mxu0 0
        %1387 = vmatpush.bf16.msra.mxu0 0
        %1388 = vmatpush.bf16.msra.mxu0 0
        %1389 = vmatpush.bf16.msra.mxu0 0
        %1390 = vmatpush.bf16.msra.mxu0 0
        %1391 = vmatpush.bf16.msra.mxu0 %v1382
        %1392 = vmatmul.bf16.gmra.mxu0 %v1379
        %v1393 = vpop.f32.mrf.mxu0
        %v1394 = vadd.f32 0.0, %v1393
        %v1395 = vpop.f32.mrf.mxu0
        %1396 = vdwg.mxu0
        %1397 = vrot.lane.b32.xlu0 %v1123, 64
        %v1398 = vpop.permute.xlu0 %1397
        %v1400 = vsel %vm1056, %v1328, 0
        %v1403 = vsel %vm1338, %v1398, 0
        %1405 = vmatpush.bf16.msra.mxu0 0
        %1406 = vmatpush.bf16.msra.mxu0 0
        %1407 = vmatpush.bf16.msra.mxu0 0
        %1408 = vmatpush.bf16.msra.mxu0 0
        %1409 = vmatpush.bf16.msra.mxu0 0
        %1410 = vmatpush.bf16.msra.mxu0 0
        %1411 = vmatpush.bf16.msra.mxu0 0
        %1412 = vmatpush.bf16.msra.mxu0 %v1403
        %1413 = vmatmul.bf16.gmra.mxu0 %v1400
        %v1414 = vpop.f32.mrf.mxu0
        %v1415 = vadd.f32 0.0, %v1414
        %v1416 = vpop.f32.mrf.mxu0
        %1417 = vdwg.mxu0
        %1418 = vrot.lane.b32.xlu0 %v1146, 64
        %v1419 = vpop.permute.xlu0 %1418
        %v1421 = vsel %vm1056, %v1329, 0
        %v1424 = vsel %vm1338, %v1419, 0
        %1426 = vmatpush.bf16.msra.mxu0 0
        %1427 = vmatpush.bf16.msra.mxu0 0
        %1428 = vmatpush.bf16.msra.mxu0 0
        %1429 = vmatpush.bf16.msra.mxu0 0
        %1430 = vmatpush.bf16.msra.mxu0 0
        %1431 = vmatpush.bf16.msra.mxu0 0
        %1432 = vmatpush.bf16.msra.mxu0 0
        %1433 = vmatpush.bf16.msra.mxu0 %v1424
        %1434 = vmatmul.bf16.gmra.mxu0 %v1421
        %v1435 = vpop.f32.mrf.mxu0
        %v1436 = vadd.f32 0.0, %v1435
        %v1437 = vpop.f32.mrf.mxu0
        %1438 = vdwg.mxu0
        %1439 = vrot.lane.b32.xlu0 %v1169, 64
        %v1440 = vpop.permute.xlu0 %1439
        %v1442 = vsel %vm1056, %v1330, 0
        %v1445 = vsel %vm1338, %v1440, 0
        %1447 = vmatpush.bf16.msra.mxu0 0
        %1448 = vmatpush.bf16.msra.mxu0 0
        %1449 = vmatpush.bf16.msra.mxu0 0
        %1450 = vmatpush.bf16.msra.mxu0 0
        %1451 = vmatpush.bf16.msra.mxu0 0
        %1452 = vmatpush.bf16.msra.mxu0 0
        %1453 = vmatpush.bf16.msra.mxu0 0
        %1454 = vmatpush.bf16.msra.mxu0 %v1445
        %1455 = vmatmul.bf16.gmra.mxu0 %v1442
        %v1456 = vpop.f32.mrf.mxu0
        %v1457 = vadd.f32 0.0, %v1456
        %v1458 = vpop.f32.mrf.mxu0
        %1459 = vdwg.mxu0
        %1460 = vrot.lane.b32.xlu0 %v1192, 64
        %v1461 = vpop.permute.xlu0 %1460
        %v1463 = vsel %vm1056, %v1331, 0
        %v1466 = vsel %vm1338, %v1461, 0
        %1468 = vmatpush.bf16.msra.mxu0 0
        %1469 = vmatpush.bf16.msra.mxu0 0
        %1470 = vmatpush.bf16.msra.mxu0 0
        %1471 = vmatpush.bf16.msra.mxu0 0
        %1472 = vmatpush.bf16.msra.mxu0 0
        %1473 = vmatpush.bf16.msra.mxu0 0
        %1474 = vmatpush.bf16.msra.mxu0 0
        %1475 = vmatpush.bf16.msra.mxu0 %v1466
        %1476 = vmatmul.bf16.gmra.mxu0 %v1463
        %v1477 = vpop.f32.mrf.mxu0
        %v1478 = vadd.f32 0.0, %v1477
        %v1479 = vpop.f32.mrf.mxu0
        %1480 = vdwg.mxu0
        %1481 = vrot.lane.b32.xlu0 %v1215, 64
        %v1482 = vpop.permute.xlu0 %1481
        %v1484 = vsel %vm1056, %v1332, 0
        %v1487 = vsel %vm1338, %v1482, 0
        %1489 = vmatpush.bf16.msra.mxu0 0
        %1490 = vmatpush.bf16.msra.mxu0 0
        %1491 = vmatpush.bf16.msra.mxu0 0
        %1492 = vmatpush.bf16.msra.mxu0 0
        %1493 = vmatpush.bf16.msra.mxu0 0
        %1494 = vmatpush.bf16.msra.mxu0 0
        %1495 = vmatpush.bf16.msra.mxu0 0
        %1496 = vmatpush.bf16.msra.mxu0 %v1487
        %1497 = vmatmul.bf16.gmra.mxu0 %v1484
        %v1498 = vpop.f32.mrf.mxu0
        %v1499 = vadd.f32 0.0, %v1498
        %v1500 = vpop.f32.mrf.mxu0
        %1501 = vdwg.mxu0
        %1504 = vrot.lane.b32.xlu0 %v1394, 8
        %v1505 = vpop.permute.xlu0 %1504
        %1506 = vrot.lane.b32.xlu0 %v1415, 8
        %v1507 = vpop.permute.xlu0 %1506
        %1512 = vrot.lane.b32.xlu0 %v1436, 16
        %v1513 = vpop.permute.xlu0 %1512
        %1514 = vrot.lane.b32.xlu0 %v1457, 16
        %v1515 = vpop.permute.xlu0 %1514
        %1520 = vrot.lane.b32.xlu0 %v1478, 24
        %v1521 = vpop.permute.xlu0 %1520
        %1522 = vrot.lane.b32.xlu0 %v1499, 24
        %v1523 = vpop.permute.xlu0 %1522
        %v1526 = vsel %vm1056, %v1352, %v1505
        %v1527 = vsel %vm1056, %v1373, %v1507
        %vm1528 = vcmask 130048
        %v1529 = vsel %vm1528, %v1526, %v1513
        %v1530 = vsel %vm1528, %v1527, %v1515
        %vm1531 = vcmask 195584
        %v1532 = vsel %vm1531, %v1529, %v1521
        %v1533 = vsel %vm1531, %v1530, %v1523
        %v1534 = vpack.c.bf16 %v1533, %v1532
        %v1535 = vld [vmem:[%s772] sm:$0xf]
        %v1536 = vld [vmem:[%s772 + $0x4] sm:$0xf]
        %v1537 = vld [vmem:[%s772 + $0x8] sm:$0xf]
        %v1538 = vld [vmem:[%s772 + $0xc] sm:$0xf]
        %v1539 = vld [vmem:[%s906] sm:$0x1]
        %v1541 = vperm.slane %v1539, 0
        %v1547 = vunpack.c.l.b16 %v1535
        %v1548 = vunpack.c.l.b16 %v1536
        %v1549 = vunpack.c.l.b16 %v1537
        %v1550 = vunpack.c.l.b16 %v1538
        %v1551 = vpack.c.b16 %v1548, %v1547
        %v1552 = vpack.c.b16 %v1550, %v1549
        %v1556 = vsel %vm994, %v1534, 0
        %1558 = vmatpush.bf16.msra.mxu0 0
        %1559 = vmatpush.bf16.msra.mxu0 0
        %1560 = vmatpush.bf16.msra.mxu0 0
        %1561 = vmatpush.bf16.msra.mxu0 0
        %1562 = vmatpush.bf16.msra.mxu0 0
        %1563 = vmatpush.bf16.msra.mxu0 0
        %1564 = vmatpush.bf16.msra.mxu0 %v1552
        %1565 = vmatpush.bf16.msra.mxu0 %v1551
        %1566 = vmatmul.bf16.gmra.mxu0 %v1556
        %v1567 = vpop.f32.mrf.mxu0
        %v1568 = vadd.f32 %v1541, %v1567
        %v1569 = vpop.f32.mrf.mxu0
        %v1570 = vadd.f32 %v1541, %v1569
        %1571 = vdwg.mxu0
        %v1572 = vadd.f32 %v971, %v1568
        %v1573 = vadd.f32 %v972, %v1570
        %v1574 = vld [vmem:[%s909] sm:$0x1]
        %v1575 = vld [vmem:[%s912] sm:$0x1]
        %v1576 = vsel %vm994, %v1572, 0.0
        %1577 = vadd.xlane.f32.xlu0 %v1576
        %v1578 = vpop.xlane.xlu0 %1577
        %v1579 = vsel %vm994, %v1573, 0.0
        %1580 = vadd.xlane.f32.xlu0 %v1579
        %v1581 = vpop.xlane.xlu0 %1580
        %v1582 = vrcp.pop 32.0
        %v1583 = vmul.f32 32.0, %v1582
        %v1584 = vsub.f32 1.0, %v1583
        %v1585 = vmul.f32 %v1582, %v1584
        %v1586 = vadd.f32 %v1582, %v1585
        %vm1587 = vweird.f32 %v1582
        %v1588 = vsel %vm1587, %v1582, %v1586
        %v1589 = vmul.f32 %v1578, %v1588
        %v1590 = vmul.f32 %v1581, %v1588
        %v1591 = vsub.f32 %v1572, %v1589
        %v1592 = vsub.f32 %v1573, %v1590
        %v1593 = vmul.f32 %v1591, %v1591
        %v1594 = vmul.f32 %v1592, %v1592
        %v1595 = vsel %vm994, %v1593, 0.0
        %1596 = vadd.xlane.f32.xlu0 %v1595
        %v1597 = vpop.xlane.xlu0 %1596
        %v1598 = vsel %vm994, %v1594, 0.0
        %1599 = vadd.xlane.f32.xlu0 %v1598
        %v1600 = vpop.xlane.xlu0 %1599
        %v1601 = vmul.f32 %v1597, %v1588
        %v1602 = vmul.f32 %v1600, %v1588
        %v1603 = vadd.f32 %v1601, 1e-05
        %v1604 = vadd.f32 %v1602, 1e-05
        %v1605 = vrsqrt.pop %v1603
        %v1606 = vmul.f32 %v1605, %v1603
        %v1607 = vmul.f32 %v1606, %v1605
        %v1608 = vmul.f32 0.5, %v1607
        %v1609 = vsub.f32 1.5, %v1608
        %v1610 = vmul.f32 %v1605, %v1609
        %vm1611 = vweird.f32 %v1603
        %vm1612 = vweird.f32 %v1605
        %vm1613 = vmor %vm1611, %vm1612
        %v1614 = vsel %vm1613, %v1605, %v1610
        %v1615 = vrsqrt.pop %v1604
        %v1616 = vmul.f32 %v1615, %v1604
        %v1617 = vmul.f32 %v1616, %v1615
        %v1618 = vmul.f32 0.5, %v1617
        %v1619 = vsub.f32 1.5, %v1618
        %v1620 = vmul.f32 %v1615, %v1619
        %vm1621 = vweird.f32 %v1604
        %vm1622 = vweird.f32 %v1615
        %vm1623 = vmor %vm1621, %vm1622
        %v1624 = vsel %vm1623, %v1615, %v1620
        %v1625 = vmul.f32 %v1591, %v1614
        %v1626 = vmul.f32 %v1592, %v1624
        %v1628 = vperm.slane %v1574, 0
        %v1630 = vmul.f32 %v1625, %v1628
        %v1631 = vmul.f32 %v1626, %v1628
        %v1633 = vperm.slane %v1575, 0
        %v1635 = vadd.f32 %v1630, %v1633
        %v1636 = vadd.f32 %v1631, %v1633
        %v1637 = vpack.c.bf16 %v1636, %v1635
        %v1638 = vld [vmem:[%s782] sm:$0xf]
        %v1639 = vld [vmem:[%s782 + $0x4] sm:$0xf]
        %v1640 = vld [vmem:[%s782 + $0x8] sm:$0xf]
        %v1641 = vld [vmem:[%s782 + $0xc] sm:$0xf]
        %v1642 = vld [vmem:[%s915] sm:$0x1]
        %v1644 = vperm.slane %v1642, 0
        %v1650 = vunpack.c.l.b16 %v1638
        %v1651 = vunpack.c.l.b16 %v1639
        %v1652 = vunpack.c.l.b16 %v1640
        %v1653 = vunpack.c.l.b16 %v1641
        %v1654 = vpack.c.b16 %v1651, %v1650
        %v1655 = vpack.c.b16 %v1653, %v1652
        %v1659 = vsel %vm994, %v1637, 0
        %1661 = vmatpush.bf16.msra.mxu0 0
        %1662 = vmatpush.bf16.msra.mxu0 0
        %1663 = vmatpush.bf16.msra.mxu0 0
        %1664 = vmatpush.bf16.msra.mxu0 0
        %1665 = vmatpush.bf16.msra.mxu0 0
        %1666 = vmatpush.bf16.msra.mxu0 0
        %1667 = vmatpush.bf16.msra.mxu0 %v1655
        %1668 = vmatpush.bf16.msra.mxu0 %v1654
        %1669 = vmatmul.bf16.gmra.mxu0 %v1659
        %v1670 = vpop.f32.mrf.mxu0
        %v1671 = vadd.f32 %v1644, %v1670
        %v1672 = vpop.f32.mrf.mxu0
        %v1673 = vadd.f32 %v1644, %v1672
        %1674 = vdwg.mxu0
        %v1675 = vmax.f32 %v1671, 0.0
        %v1676 = vmax.f32 %v1673, 0.0
        %v1677 = vpack.c.bf16 %v1676, %v1675
        %v1678 = vld [vmem:[%s792] sm:$0xf]
        %v1679 = vld [vmem:[%s792 + $0x4] sm:$0xf]
        %v1680 = vld [vmem:[%s792 + $0x8] sm:$0xf]
        %v1681 = vld [vmem:[%s792 + $0xc] sm:$0xf]
        %v1682 = vld [vmem:[%s918] sm:$0x1]
        %v1684 = vperm.slane %v1682, 0
        %v1690 = vunpack.c.l.b16 %v1678
        %v1691 = vunpack.c.l.b16 %v1679
        %v1692 = vunpack.c.l.b16 %v1680
        %v1693 = vunpack.c.l.b16 %v1681
        %v1694 = vpack.c.b16 %v1691, %v1690
        %v1695 = vpack.c.b16 %v1693, %v1692
        %v1699 = vsel %vm994, %v1677, 0
        %1701 = vmatpush.bf16.msra.mxu0 0
        %1702 = vmatpush.bf16.msra.mxu0 0
        %1703 = vmatpush.bf16.msra.mxu0 0
        %1704 = vmatpush.bf16.msra.mxu0 0
        %1705 = vmatpush.bf16.msra.mxu0 0
        %1706 = vmatpush.bf16.msra.mxu0 0
        %1707 = vmatpush.bf16.msra.mxu0 %v1695
        %1708 = vmatpush.bf16.msra.mxu0 %v1694
        %1709 = vmatmul.bf16.gmra.mxu0 %v1699
        %v1710 = vpop.f32.mrf.mxu0
        %v1711 = vadd.f32 %v1684, %v1710
        %v1712 = vpop.f32.mrf.mxu0
        %v1713 = vadd.f32 %v1684, %v1712
        %1714 = vdwg.mxu0
        %v1715 = vadd.f32 %v1635, %v1711
        %v1716 = vadd.f32 %v1636, %v1713
        %v1717 = vld [vmem:[%s801] sm:$0x1]
        %v1718 = vld [vmem:[%s921] sm:$0x1]
        %v1719 = vsel %vm994, %v1715, 0.0
        %1720 = vadd.xlane.f32.xlu0 %v1719
        %v1721 = vpop.xlane.xlu0 %1720
        %v1722 = vsel %vm994, %v1716, 0.0
        %1723 = vadd.xlane.f32.xlu0 %v1722
        %v1724 = vpop.xlane.xlu0 %1723
        %v1725 = vmul.f32 %v1721, %v1588
        %v1726 = vmul.f32 %v1724, %v1588
        %v1727 = vsub.f32 %v1715, %v1725
        %v1728 = vsub.f32 %v1716, %v1726
        %v1729 = vmul.f32 %v1727, %v1727
        %v1730 = vmul.f32 %v1728, %v1728
        %v1731 = vsel %vm994, %v1729, 0.0
        %1732 = vadd.xlane.f32.xlu0 %v1731
        %v1733 = vpop.xlane.xlu0 %1732
        %v1734 = vsel %vm994, %v1730, 0.0
        %1735 = vadd.xlane.f32.xlu0 %v1734
        %v1736 = vpop.xlane.xlu0 %1735
        %v1737 = vmul.f32 %v1733, %v1588
        %v1738 = vmul.f32 %v1736, %v1588
        %v1739 = vadd.f32 %v1737, 1e-05
        %v1740 = vadd.f32 %v1738, 1e-05
        %v1741 = vrsqrt.pop %v1739
        %v1742 = vmul.f32 %v1741, %v1739
        %v1743 = vmul.f32 %v1742, %v1741
        %v1744 = vmul.f32 0.5, %v1743
        %v1745 = vsub.f32 1.5, %v1744
        %v1746 = vmul.f32 %v1741, %v1745
        %vm1747 = vweird.f32 %v1739
        %vm1748 = vweird.f32 %v1741
        %vm1749 = vmor %vm1747, %vm1748
        %v1750 = vsel %vm1749, %v1741, %v1746
        %v1751 = vrsqrt.pop %v1740
        %v1752 = vmul.f32 %v1751, %v1740
        %v1753 = vmul.f32 %v1752, %v1751
        %v1754 = vmul.f32 0.5, %v1753
        %v1755 = vsub.f32 1.5, %v1754
        %v1756 = vmul.f32 %v1751, %v1755
        %vm1757 = vweird.f32 %v1740
        %vm1758 = vweird.f32 %v1751
        %vm1759 = vmor %vm1757, %vm1758
        %v1760 = vsel %vm1759, %v1751, %v1756
        %v1761 = vmul.f32 %v1727, %v1750
        %v1762 = vmul.f32 %v1728, %v1760
        %v1764 = vperm.slane %v1717, 0
        %v1766 = vmul.f32 %v1761, %v1764
        %v1767 = vmul.f32 %v1762, %v1764
        %v1769 = vperm.slane %v1718, 0
        %v1771 = vadd.f32 %v1766, %v1769
        %v1772 = vadd.f32 %v1767, %v1769
        %1773 = vst.msk [vmem:[#allocation2] sm:$0xff] %vm994, %v1771
        %1774 = vst.msk [vmem:[#allocation2 + $0x8] sm:$0xff] %vm994, %v1772
        %p1775 = scmp.eq.s32.totalorder %s46, 1
        // Predicated region
        $region129: #{tpu_custom_call.1} parent=91 // pred_check
          %p1776 = pneg %p1775
        $region130: #{tpu_custom_call.1} parent=91 // pred_check_branch
          %1778 = sbr.rel (%p1776) target = $region132
        $region131: #{tpu_custom_call.1} parent=91 // pred_region
          %v1779 = vpack.c.bf16 %v1772, %v1771
          %v1780 = vld [vmem:[%s16] sm:$0xf]
          %v1781 = vld [vmem:[%s16 + $0x4] sm:$0xf]
          %v1782 = vld [vmem:[%s16 + $0x8] sm:$0xf]
          %v1783 = vld [vmem:[%s16 + $0xc] sm:$0xf]
          %v1784 = vld [vmem:[%s17] sm:$0x1]
          %v1786 = vperm.slane %v1784, 0
          %v1792 = vunpack.c.l.b16 %v1780
          %v1793 = vunpack.c.l.b16 %v1781
          %v1794 = vunpack.c.l.b16 %v1782
          %v1795 = vunpack.c.l.b16 %v1783
          %v1796 = vpack.c.b16 %v1793, %v1792
          %v1797 = vpack.c.b16 %v1795, %v1794
          %v1801 = vsel %vm994, %v1779, 0
          %1803 = vmatpush.bf16.msra.mxu0 0
          %1804 = vmatpush.bf16.msra.mxu0 0
          %1805 = vmatpush.bf16.msra.mxu0 0
          %1806 = vmatpush.bf16.msra.mxu0 0
          %1807 = vmatpush.bf16.msra.mxu0 0
          %1808 = vmatpush.bf16.msra.mxu0 0
          %1809 = vmatpush.bf16.msra.mxu0 %v1797
          %1810 = vmatpush.bf16.msra.mxu0 %v1796
          %1811 = vmatmul.bf16.gmra.mxu0 %v1801
          %v1812 = vpop.f32.mrf.mxu0
          %v1813 = vadd.f32 %v1786, %v1812
          %v1814 = vpop.f32.mrf.mxu0
          %v1815 = vadd.f32 %v1786, %v1814
          %1816 = vdwg.mxu0
          %1817 = vst.msk [vmem:[#allocation17] sm:$0xff] %vm1056, %v1813
          %1818 = vst.msk [vmem:[#allocation17 + $0x8] sm:$0xff] %vm1056, %v1815
        $region132: #{tpu_custom_call.1} parent=91 // pred_fallthru
          _
        // Predicated region
        $region133: #{tpu_custom_call.1} parent=91 // pred_check
          %p1819 = pneg %p514
        $region134: #{tpu_custom_call.1} parent=91 // pred_check_branch
          %1821 = sbr.rel (%p1819) target = $region136
        $region135: #{tpu_custom_call.1} parent=91 // pred_region
          %s1822 = smul.u32 2, %s45
          %1824 = vsyncadd [#allocation5], 0
          %s1825 = smul.addr %s1822, 8
          %s1826 = scalar_lea.hbm %s18, %s1825
          %s1827 = sshll.u32 [#allocation17], 4
          %s1828 = int_to_ptr.vmem [resolvable:$true] %s1827
          %s1829 = sshll.u32 %s1826, 4
          %s1830 = int_to_ptr.hbm [resolvable:$true] %s1829
          %1835 = dma.vmem_to_hbm [thread:$0]  %s1828, 256, %s1830, [#allocation5], 128, 128, 8
        $region136: #{tpu_custom_call.1} parent=91 // pred_fallthru
          _
        // Predicated region
        $region137: #{tpu_custom_call.1} parent=91 // pred_check
          %p1836 = pneg %p514
        $region138: #{tpu_custom_call.1} parent=91 // pred_check_branch
          %1838 = sbr.rel (%p1836) target = $region140
        $region139: #{tpu_custom_call.1} parent=91 // pred_region
          %1840 = dma.done [#allocation5], 256
        $region140: #{tpu_custom_call.1} parent=91 // pred_fallthru
          _
      $region92: #{tpu_custom_call.1} parent=5 // pred_fallthru
        _
      %p1841 = scmp.le.s32.totalorder 2, %s36
      // Predicated region
      $region141: #{tpu_custom_call.1} parent=5 // pred_check
        %p1842 = pneg %p1841
      $region142: #{tpu_custom_call.1} parent=5 // pred_check_branch
        %1844 = sbr.rel (%p1842) target = $region144
      $region143: #{tpu_custom_call.1} parent=5 // pred_region
        %s1845 = ssub.s32 %s36, 2
      $region144: #{tpu_custom_call.1} parent=5 // pred_fallthru
        _
    $region6: #{tpu_custom_call.1} parent=1 // loop_footer
      %s40 = sadd.s32 1, %s36
    $region7: #{tpu_custom_call.1} parent=1 // loop_footer_branch
      %35 = sbr.rel target = $region3
    $region8: #{tpu_custom_call.1} parent=1 // loop_exit
      _
    %1846 = vsyncpa [#allocation4], 1
    %s1847 = scalar_lea.sflag [#allocation4], 1
    %1848 = vsyncpa %s1847, 1
    %1849 = vsyncpa [#allocation7], 1
    %1850 = vsyncpa [#allocation10], 1
    %s1851 = scalar_lea.sflag [#allocation10], 1
    %1852 = vsyncpa %s1851, 1
    %1853 = vsyncpa [#allocation13], 1
    %s1854 = scalar_lea.sflag [#allocation13], 1
    %1855 = vsyncpa %s1854, 1
    %1856 = vsyncpa [#allocation16], 1
    %s1857 = scalar_lea.sflag [#allocation16], 1
    %1858 = vsyncpa %s1857, 1
    %1859 = vsyncpa [#allocation5], 1
    %s1860 = scalar_lea.sflag [#allocation5], 1
    %1861 = vsyncpa %s1860, 1

</llo_original>
